<compile_context>
chip_gen: v6e
topology: v6e:2x2x1
jax: 0.10.0
libtpu: 0.0.40
codegen_flags: <defaults>
</compile_context>

<pallas_src>
import jax
import jax.numpy as jnp
from jax import lax
from jax.experimental import pallas as pl
from jax.experimental.pallas import tpu as pltpu


def _lstm_fc_relu_kernel(x_ref, wih_ref, whh_ref, b_ref, wfc_ref, bfc_ref,
                         out_ref, hs_sc):
    """Single-shot kernel: whole LSTM recurrence + fc4 + ReLU.

    x_ref  : (B, T, I)   f32   batch-first input
    wih_ref: (I, 4H)     f32   pre-transposed weight_ih_l0 (torch gate order i,f,g,o)
    whh_ref: (H, 4H)     f32   pre-transposed weight_hh_l0
    b_ref  : (1, 4H)     f32   bias_ih_l0 + bias_hh_l0
    wfc_ref: (H, I)      f32   pre-transposed fc4.weight   [H == I required by the module]
    bfc_ref: (1, I)      f32   fc4.bias
    out_ref: (B, T, I)   f32   batch-first output (no wrapper transpose needed)
    hs_sc  : (B, T, H)   f32   scratch collecting per-step hidden states
    """
    B, T, I = x_ref.shape
    H = whh_ref.shape[0]

    whh = whh_ref[...]

    # Input-gate contribution for every timestep in one MXU matmul, off the
    # serial recurrence critical path: (B*T, I) @ (I, 4H) + b.
    xw = (jnp.dot(x_ref[...].reshape(B * T, I), wih_ref[...],
                  preferred_element_type=jnp.float32) + b_ref[...]
          ).reshape(B, T, 4 * H)

    # Serial LSTM recurrence, fully unrolled (T is small and static).
    # h and c live in vregs; only the hidden-state history is written to
    # scratch, which is off the h/c dependency chain.
    h = jnp.zeros((B, H), jnp.float32)
    c = jnp.zeros((B, H), jnp.float32)
    for t in range(T):
        g = xw[:, t, :] + jnp.dot(h, whh, preferred_element_type=jnp.float32)  # (B, 4H)
        # One full-vreg sigmoid + one full-vreg tanh (EUP), then lane-slice the
        # torch-ordered gates: i = [0:H], f = [H:2H], g = [2H:3H], o = [3H:4H].
        sg = jax.nn.sigmoid(g)
        tg = jnp.tanh(g)
        c = sg[:, 1 * H:2 * H] * c + sg[:, 0 * H:1 * H] * tg[:, 2 * H:3 * H]
        h = sg[:, 3 * H:4 * H] * jnp.tanh(c)
        hs_sc[:, t, :] = h

    # fc4 + bias + ReLU hoisted out of the loop: one (B*T, H) @ (H, I) matmul
    # and a single bulk store, already in batch-first (B, T, I) layout.
    y = jnp.dot(hs_sc[...].reshape(B * T, H), wfc_ref[...],
                preferred_element_type=jnp.float32) + bfc_ref[...]
    y = jnp.maximum(y, 0.0)
    out_ref[...] = y.reshape(B, T, I).astype(out_ref.dtype)


def simple_midi_forward(x, params):
    """x: (B, T, I) float32. Returns (y, 0, 0) with y: (B, T, I)."""
    B, T, I = x.shape
    H = params["w_hh"].shape[1]            # w_hh: (4H, H)
    assert params["w_fc"].shape == (I, I), "fc4 is Linear(input_size, input_size)"
    assert H == I, "SimpleMIDI.forward only type-checks when hidden_size == input_size"

    wih_t = params["w_ih"].T                                   # (I, 4H)
    whh_t = params["w_hh"].T                                   # (H, 4H)
    b = (params["b_ih"] + params["b_hh"]).reshape(1, 4 * H)    # (1, 4H)
    wfc_t = params["w_fc"].T                                   # (H, I)
    bfc = params["b_fc"].reshape(1, I)                         # (1, I)

    flops = 2 * B * T * I * 4 * H + 2 * B * T * H * 4 * H + 2 * B * T * H * I
    transcendentals = B * T * 9 * H
    bytes_accessed = 4 * (x.size + wih_t.size + whh_t.size + b.size
                          + wfc_t.size + bfc.size + B * T * I)

    y = pl.pallas_call(
        _lstm_fc_relu_kernel,
        out_shape=jax.ShapeDtypeStruct((B, T, I), x.dtype),
        in_specs=[pl.BlockSpec(memory_space=pltpu.MemorySpace.VMEM)] * 6,
        out_specs=pl.BlockSpec(memory_space=pltpu.MemorySpace.VMEM),
        scratch_shapes=[pltpu.VMEM((B, T, H), jnp.float32)],   # hidden-state history
        cost_estimate=pl.CostEstimate(flops=flops,
                                      transcendentals=transcendentals,
                                      bytes_accessed=bytes_accessed),
    )(x, wih_t, whh_t, b, wfc_t, bfc)
    # NOTE: the recurrence is independent per batch element. If B grows, add a
    # grid over B with dimension_semantics=("parallel",) so v7x's two
    # TensorCores each take half the batch; kept gridless here so the tiny
    # B=2 batch stays vectorized in a single pass (faster on v5e/v6e).
    return y, 0, 0


def reference_forward(x, params):
    """Pure-JAX reference of the same forward (for correctness check)."""
    B = x.shape[0]
    H = params["w_hh"].shape[1]
    wih, whh = params["w_ih"], params["w_hh"]
    b = params["b_ih"] + params["b_hh"]

    def cell(carry, xt):
        h, c = carry
        g = xt @ wih.T + h @ whh.T + b
        i = jax.nn.sigmoid(g[:, 0 * H:1 * H])
        f = jax.nn.sigmoid(g[:, 1 * H:2 * H])
        gg = jnp.tanh(g[:, 2 * H:3 * H])
        o = jax.nn.sigmoid(g[:, 3 * H:4 * H])
        c = f * c + i * gg
        h = o * jnp.tanh(c)
        return (h, c), h

    h0 = jnp.zeros((B, H), jnp.float32)
    c0 = jnp.zeros((B, H), jnp.float32)
    _, hs = lax.scan(cell, (h0, c0), jnp.transpose(x, (1, 0, 2)))
    hs = jnp.transpose(hs, (1, 0, 2))                              # (B, T, H)
    return jnp.maximum(hs @ params["w_fc"].T + params["b_fc"], 0.0)


def init_params(key, input_size, hidden_size):
    """Deterministic init mimicking torch defaults: U(-1/sqrt(H), 1/sqrt(H))."""
    k = 1.0 / jnp.sqrt(jnp.float32(hidden_size))
    ks = jax.random.split(key, 6)
    u = lambda kk, shape: jax.random.uniform(kk, shape, jnp.float32, -k, k)
    return {
        "w_ih": u(ks[0], (4 * hidden_size, input_size)),
        "w_hh": u(ks[1], (4 * hidden_size, hidden_size)),
        "b_ih": u(ks[2], (4 * hidden_size,)),
        "b_hh": u(ks[3], (4 * hidden_size,)),
        "w_fc": u(ks[4], (input_size, input_size)),   # fc4: Linear(input_size, input_size)
        "b_fc": u(ks[5], (input_size,)),
    }


if __name__ == "__main__":
    # SimpleMIDI(input_size=32, hidden_size=32, embedding_size=16, sequence_length=8)
    # (hidden_size must equal input_size for fc4 to type-check; embedding_size unused in forward)
    B, T, I, H = 2, 8, 32, 32

    key = jax.random.PRNGKey(0)
    pkey, xkey = jax.random.split(key)
    params = init_params(pkey, I, H)
    x = jax.random.normal(xkey, (B, T, I), jnp.float32)

    y, z0, z1 = simple_midi_forward(x, params)
    y = jax.block_until_ready(y)
    y_ref = reference_forward(x, params)

    assert y.shape == (B, T, I) and z0 == 0 and z1 == 0
    assert jnp.allclose(y, y_ref, atol=1e-5, rtol=1e-5), "mismatch vs pure-JAX reference"
    print("KERNEL_OK")
</pallas_src>

<mosaic_0001>
module attributes {stable_mosaic.version = 11 : i64} {
  func.func @_lstm_fc_relu_kernel(%arg0: memref<2x8x32xf32, #tpu.memory_space<vmem>>, %arg1: memref<32x128xf32, #tpu.memory_space<vmem>>, %arg2: memref<32x128xf32, #tpu.memory_space<vmem>>, %arg3: memref<1x128xf32, #tpu.memory_space<vmem>>, %arg4: memref<32x32xf32, #tpu.memory_space<vmem>>, %arg5: memref<1x32xf32, #tpu.memory_space<vmem>>, %arg6: memref<2x8x32xf32, #tpu.memory_space<vmem>>, %arg7: memref<2x8x32xf32, #tpu.memory_space<vmem>>) attributes {dimension_semantics = [], scalar_prefetch = 0 : i64, scratch_operands = 1 : i64, tpu.core_type = #tpu.core_type<tc>} {
    %c0 = arith.constant 0 : index
    %c0_0 = arith.constant 0 : index
    %0 = vector.load %arg2[%c0, %c0_0] : memref<32x128xf32, #tpu.memory_space<vmem>>, vector<32x128xf32>
    %c0_1 = arith.constant 0 : index
    %c0_2 = arith.constant 0 : index
    %c0_3 = arith.constant 0 : index
    %1 = vector.load %arg0[%c0_1, %c0_2, %c0_3] : memref<2x8x32xf32, #tpu.memory_space<vmem>>, vector<2x8x32xf32>
    %2 = vector.shape_cast %1 : vector<2x8x32xf32> to vector<16x32xf32>
    %c0_4 = arith.constant 0 : index
    %c0_5 = arith.constant 0 : index
    %3 = vector.load %arg1[%c0_4, %c0_5] : memref<32x128xf32, #tpu.memory_space<vmem>>, vector<32x128xf32>
    %cst = arith.constant dense<0.000000e+00> : vector<16x128xf32>
    %4 = tpu.matmul %2, %3, %cst {dimension_numbers = #tpu.dot_dimension_numbers<[1], [0], [0], [1], [0, 0, 1, 1], [], []>} : vector<16x32xf32>, vector<32x128xf32>, vector<16x128xf32> -> vector<16x128xf32>
    %c0_6 = arith.constant 0 : index
    %c0_7 = arith.constant 0 : index
    %5 = vector.load %arg3[%c0_6, %c0_7] : memref<1x128xf32, #tpu.memory_space<vmem>>, vector<1x128xf32>
    %6 = vector.broadcast %5 : vector<1x128xf32> to vector<16x128xf32>
    %7 = arith.addf %4, %6 : vector<16x128xf32>
    %8 = vector.shape_cast %7 : vector<16x128xf32> to vector<2x8x128xf32>
    %cst_8 = arith.constant 0.000000e+00 : f32
    %9 = vector.broadcast %cst_8 : f32 to vector<2x32xf32>
    %cst_9 = arith.constant 0.000000e+00 : f32
    %10 = vector.broadcast %cst_9 : f32 to vector<2x32xf32>
    %11 = vector.extract_strided_slice %8 {offsets = [0, 0, 0], sizes = [2, 1, 128], strides = [1, 1, 1]} : vector<2x8x128xf32> to vector<2x1x128xf32>
    %12 = vector.shape_cast %11 : vector<2x1x128xf32> to vector<2x128xf32>
    %cst_10 = arith.constant dense<0.000000e+00> : vector<2x128xf32>
    %13 = tpu.matmul %9, %0, %cst_10 {dimension_numbers = #tpu.dot_dimension_numbers<[1], [0], [0], [1], [0, 0, 1, 1], [], []>} : vector<2x32xf32>, vector<32x128xf32>, vector<2x128xf32> -> vector<2x128xf32>
    %14 = arith.addf %12, %13 : vector<2x128xf32>
    %15 = arith.negf %14 : vector<2x128xf32>
    %16 = math.exp %15 : vector<2x128xf32>
    %cst_11 = arith.constant 1.000000e+00 : f32
    %17 = vector.broadcast %cst_11 : f32 to vector<2x128xf32>
    %18 = arith.addf %17, %16 : vector<2x128xf32>
    %19 = arith.divf %17, %18 : vector<2x128xf32>
    %20 = math.tanh %14 : vector<2x128xf32>
    %21 = vector.extract_strided_slice %19 {offsets = [0, 32], sizes = [2, 32], strides = [1, 1]} : vector<2x128xf32> to vector<2x32xf32>
    %22 = arith.mulf %21, %10 : vector<2x32xf32>
    %23 = vector.extract_strided_slice %19 {offsets = [0, 0], sizes = [2, 32], strides = [1, 1]} : vector<2x128xf32> to vector<2x32xf32>
    %24 = vector.extract_strided_slice %20 {offsets = [0, 64], sizes = [2, 32], strides = [1, 1]} : vector<2x128xf32> to vector<2x32xf32>
    %25 = arith.mulf %23, %24 : vector<2x32xf32>
    %26 = arith.addf %22, %25 : vector<2x32xf32>
    %27 = vector.extract_strided_slice %19 {offsets = [0, 96], sizes = [2, 32], strides = [1, 1]} : vector<2x128xf32> to vector<2x32xf32>
    %28 = math.tanh %26 : vector<2x32xf32>
    %29 = arith.mulf %27, %28 : vector<2x32xf32>
    %c0_12 = arith.constant 0 : index
    %c0_13 = arith.constant 0 : index
    %c0_14 = arith.constant 0 : index
    %30 = vector.load %arg7[%c0_12, %c0_13, %c0_14] : memref<2x8x32xf32, #tpu.memory_space<vmem>>, vector<2x1x32xf32>
    %31 = vector.shape_cast %30 : vector<2x1x32xf32> to vector<2x32xf32>
    %32 = vector.shape_cast %29 : vector<2x32xf32> to vector<2x1x32xf32>
    tpu.vector_store %arg7[%c0_12, %c0_13, %c0_14], %32 {strides = array<i32>} : memref<2x8x32xf32, #tpu.memory_space<vmem>>, vector<2x1x32xf32>,
    %33 = vector.extract_strided_slice %8 {offsets = [0, 1, 0], sizes = [2, 1, 128], strides = [1, 1, 1]} : vector<2x8x128xf32> to vector<2x1x128xf32>
    %34 = vector.shape_cast %33 : vector<2x1x128xf32> to vector<2x128xf32>
    %cst_15 = arith.constant dense<0.000000e+00> : vector<2x128xf32>
    %35 = tpu.matmul %29, %0, %cst_15 {dimension_numbers = #tpu.dot_dimension_numbers<[1], [0], [0], [1], [0, 0, 1, 1], [], []>} : vector<2x32xf32>, vector<32x128xf32>, vector<2x128xf32> -> vector<2x128xf32>
    %36 = arith.addf %34, %35 : vector<2x128xf32>
    %37 = arith.negf %36 : vector<2x128xf32>
    %38 = math.exp %37 : vector<2x128xf32>
    %cst_16 = arith.constant 1.000000e+00 : f32
    %39 = vector.broadcast %cst_16 : f32 to vector<2x128xf32>
    %40 = arith.addf %39, %38 : vector<2x128xf32>
    %41 = arith.divf %39, %40 : vector<2x128xf32>
    %42 = math.tanh %36 : vector<2x128xf32>
    %43 = vector.extract_strided_slice %41 {offsets = [0, 32], sizes = [2, 32], strides = [1, 1]} : vector<2x128xf32> to vector<2x32xf32>
    %44 = arith.mulf %43, %26 : vector<2x32xf32>
    %45 = vector.extract_strided_slice %41 {offsets = [0, 0], sizes = [2, 32], strides = [1, 1]} : vector<2x128xf32> to vector<2x32xf32>
    %46 = vector.extract_strided_slice %42 {offsets = [0, 64], sizes = [2, 32], strides = [1, 1]} : vector<2x128xf32> to vector<2x32xf32>
    %47 = arith.mulf %45, %46 : vector<2x32xf32>
    %48 = arith.addf %44, %47 : vector<2x32xf32>
    %49 = vector.extract_strided_slice %41 {offsets = [0, 96], sizes = [2, 32], strides = [1, 1]} : vector<2x128xf32> to vector<2x32xf32>
    %50 = math.tanh %48 : vector<2x32xf32>
    %51 = arith.mulf %49, %50 : vector<2x32xf32>
    %c0_17 = arith.constant 0 : index
    %c1 = arith.constant 1 : index
    %c0_18 = arith.constant 0 : index
    %52 = vector.load %arg7[%c0_17, %c1, %c0_18] : memref<2x8x32xf32, #tpu.memory_space<vmem>>, vector<2x1x32xf32>
    %53 = vector.shape_cast %52 : vector<2x1x32xf32> to vector<2x32xf32>
    %54 = vector.shape_cast %51 : vector<2x32xf32> to vector<2x1x32xf32>
    tpu.vector_store %arg7[%c0_17, %c1, %c0_18], %54 {strides = array<i32>} : memref<2x8x32xf32, #tpu.memory_space<vmem>>, vector<2x1x32xf32>,
    %55 = vector.extract_strided_slice %8 {offsets = [0, 2, 0], sizes = [2, 1, 128], strides = [1, 1, 1]} : vector<2x8x128xf32> to vector<2x1x128xf32>
    %56 = vector.shape_cast %55 : vector<2x1x128xf32> to vector<2x128xf32>
    %cst_19 = arith.constant dense<0.000000e+00> : vector<2x128xf32>
    %57 = tpu.matmul %51, %0, %cst_19 {dimension_numbers = #tpu.dot_dimension_numbers<[1], [0], [0], [1], [0, 0, 1, 1], [], []>} : vector<2x32xf32>, vector<32x128xf32>, vector<2x128xf32> -> vector<2x128xf32>
    %58 = arith.addf %56, %57 : vector<2x128xf32>
    %59 = arith.negf %58 : vector<2x128xf32>
    %60 = math.exp %59 : vector<2x128xf32>
    %cst_20 = arith.constant 1.000000e+00 : f32
    %61 = vector.broadcast %cst_20 : f32 to vector<2x128xf32>
    %62 = arith.addf %61, %60 : vector<2x128xf32>
    %63 = arith.divf %61, %62 : vector<2x128xf32>
    %64 = math.tanh %58 : vector<2x128xf32>
    %65 = vector.extract_strided_slice %63 {offsets = [0, 32], sizes = [2, 32], strides = [1, 1]} : vector<2x128xf32> to vector<2x32xf32>
    %66 = arith.mulf %65, %48 : vector<2x32xf32>
    %67 = vector.extract_strided_slice %63 {offsets = [0, 0], sizes = [2, 32], strides = [1, 1]} : vector<2x128xf32> to vector<2x32xf32>
    %68 = vector.extract_strided_slice %64 {offsets = [0, 64], sizes = [2, 32], strides = [1, 1]} : vector<2x128xf32> to vector<2x32xf32>
    %69 = arith.mulf %67, %68 : vector<2x32xf32>
    %70 = arith.addf %66, %69 : vector<2x32xf32>
    %71 = vector.extract_strided_slice %63 {offsets = [0, 96], sizes = [2, 32], strides = [1, 1]} : vector<2x128xf32> to vector<2x32xf32>
    %72 = math.tanh %70 : vector<2x32xf32>
    %73 = arith.mulf %71, %72 : vector<2x32xf32>
    %c0_21 = arith.constant 0 : index
    %c2 = arith.constant 2 : index
    %c0_22 = arith.constant 0 : index
    %74 = vector.load %arg7[%c0_21, %c2, %c0_22] : memref<2x8x32xf32, #tpu.memory_space<vmem>>, vector<2x1x32xf32>
    %75 = vector.shape_cast %74 : vector<2x1x32xf32> to vector<2x32xf32>
    %76 = vector.shape_cast %73 : vector<2x32xf32> to vector<2x1x32xf32>
    tpu.vector_store %arg7[%c0_21, %c2, %c0_22], %76 {strides = array<i32>} : memref<2x8x32xf32, #tpu.memory_space<vmem>>, vector<2x1x32xf32>,
    %77 = vector.extract_strided_slice %8 {offsets = [0, 3, 0], sizes = [2, 1, 128], strides = [1, 1, 1]} : vector<2x8x128xf32> to vector<2x1x128xf32>
    %78 = vector.shape_cast %77 : vector<2x1x128xf32> to vector<2x128xf32>
    %cst_23 = arith.constant dense<0.000000e+00> : vector<2x128xf32>
    %79 = tpu.matmul %73, %0, %cst_23 {dimension_numbers = #tpu.dot_dimension_numbers<[1], [0], [0], [1], [0, 0, 1, 1], [], []>} : vector<2x32xf32>, vector<32x128xf32>, vector<2x128xf32> -> vector<2x128xf32>
    %80 = arith.addf %78, %79 : vector<2x128xf32>
    %81 = arith.negf %80 : vector<2x128xf32>
    %82 = math.exp %81 : vector<2x128xf32>
    %cst_24 = arith.constant 1.000000e+00 : f32
    %83 = vector.broadcast %cst_24 : f32 to vector<2x128xf32>
    %84 = arith.addf %83, %82 : vector<2x128xf32>
    %85 = arith.divf %83, %84 : vector<2x128xf32>
    %86 = math.tanh %80 : vector<2x128xf32>
    %87 = vector.extract_strided_slice %85 {offsets = [0, 32], sizes = [2, 32], strides = [1, 1]} : vector<2x128xf32> to vector<2x32xf32>
    %88 = arith.mulf %87, %70 : vector<2x32xf32>
    %89 = vector.extract_strided_slice %85 {offsets = [0, 0], sizes = [2, 32], strides = [1, 1]} : vector<2x128xf32> to vector<2x32xf32>
    %90 = vector.extract_strided_slice %86 {offsets = [0, 64], sizes = [2, 32], strides = [1, 1]} : vector<2x128xf32> to vector<2x32xf32>
    %91 = arith.mulf %89, %90 : vector<2x32xf32>
    %92 = arith.addf %88, %91 : vector<2x32xf32>
    %93 = vector.extract_strided_slice %85 {offsets = [0, 96], sizes = [2, 32], strides = [1, 1]} : vector<2x128xf32> to vector<2x32xf32>
    %94 = math.tanh %92 : vector<2x32xf32>
    %95 = arith.mulf %93, %94 : vector<2x32xf32>
    %c0_25 = arith.constant 0 : index
    %c3 = arith.constant 3 : index
    %c0_26 = arith.constant 0 : index
    %96 = vector.load %arg7[%c0_25, %c3, %c0_26] : memref<2x8x32xf32, #tpu.memory_space<vmem>>, vector<2x1x32xf32>
    %97 = vector.shape_cast %96 : vector<2x1x32xf32> to vector<2x32xf32>
    %98 = vector.shape_cast %95 : vector<2x32xf32> to vector<2x1x32xf32>
    tpu.vector_store %arg7[%c0_25, %c3, %c0_26], %98 {strides = array<i32>} : memref<2x8x32xf32, #tpu.memory_space<vmem>>, vector<2x1x32xf32>,
    %99 = vector.extract_strided_slice %8 {offsets = [0, 4, 0], sizes = [2, 1, 128], strides = [1, 1, 1]} : vector<2x8x128xf32> to vector<2x1x128xf32>
    %100 = vector.shape_cast %99 : vector<2x1x128xf32> to vector<2x128xf32>
    %cst_27 = arith.constant dense<0.000000e+00> : vector<2x128xf32>
    %101 = tpu.matmul %95, %0, %cst_27 {dimension_numbers = #tpu.dot_dimension_numbers<[1], [0], [0], [1], [0, 0, 1, 1], [], []>} : vector<2x32xf32>, vector<32x128xf32>, vector<2x128xf32> -> vector<2x128xf32>
    %102 = arith.addf %100, %101 : vector<2x128xf32>
    %103 = arith.negf %102 : vector<2x128xf32>
    %104 = math.exp %103 : vector<2x128xf32>
    %cst_28 = arith.constant 1.000000e+00 : f32
    %105 = vector.broadcast %cst_28 : f32 to vector<2x128xf32>
    %106 = arith.addf %105, %104 : vector<2x128xf32>
    %107 = arith.divf %105, %106 : vector<2x128xf32>
    %108 = math.tanh %102 : vector<2x128xf32>
    %109 = vector.extract_strided_slice %107 {offsets = [0, 32], sizes = [2, 32], strides = [1, 1]} : vector<2x128xf32> to vector<2x32xf32>
    %110 = arith.mulf %109, %92 : vector<2x32xf32>
    %111 = vector.extract_strided_slice %107 {offsets = [0, 0], sizes = [2, 32], strides = [1, 1]} : vector<2x128xf32> to vector<2x32xf32>
    %112 = vector.extract_strided_slice %108 {offsets = [0, 64], sizes = [2, 32], strides = [1, 1]} : vector<2x128xf32> to vector<2x32xf32>
    %113 = arith.mulf %111, %112 : vector<2x32xf32>
    %114 = arith.addf %110, %113 : vector<2x32xf32>
    %115 = vector.extract_strided_slice %107 {offsets = [0, 96], sizes = [2, 32], strides = [1, 1]} : vector<2x128xf32> to vector<2x32xf32>
    %116 = math.tanh %114 : vector<2x32xf32>
    %117 = arith.mulf %115, %116 : vector<2x32xf32>
    %c0_29 = arith.constant 0 : index
    %c4 = arith.constant 4 : index
    %c0_30 = arith.constant 0 : index
    %118 = vector.load %arg7[%c0_29, %c4, %c0_30] : memref<2x8x32xf32, #tpu.memory_space<vmem>>, vector<2x1x32xf32>
    %119 = vector.shape_cast %118 : vector<2x1x32xf32> to vector<2x32xf32>
    %120 = vector.shape_cast %117 : vector<2x32xf32> to vector<2x1x32xf32>
    tpu.vector_store %arg7[%c0_29, %c4, %c0_30], %120 {strides = array<i32>} : memref<2x8x32xf32, #tpu.memory_space<vmem>>, vector<2x1x32xf32>,
    %121 = vector.extract_strided_slice %8 {offsets = [0, 5, 0], sizes = [2, 1, 128], strides = [1, 1, 1]} : vector<2x8x128xf32> to vector<2x1x128xf32>
    %122 = vector.shape_cast %121 : vector<2x1x128xf32> to vector<2x128xf32>
    %cst_31 = arith.constant dense<0.000000e+00> : vector<2x128xf32>
    %123 = tpu.matmul %117, %0, %cst_31 {dimension_numbers = #tpu.dot_dimension_numbers<[1], [0], [0], [1], [0, 0, 1, 1], [], []>} : vector<2x32xf32>, vector<32x128xf32>, vector<2x128xf32> -> vector<2x128xf32>
    %124 = arith.addf %122, %123 : vector<2x128xf32>
    %125 = arith.negf %124 : vector<2x128xf32>
    %126 = math.exp %125 : vector<2x128xf32>
    %cst_32 = arith.constant 1.000000e+00 : f32
    %127 = vector.broadcast %cst_32 : f32 to vector<2x128xf32>
    %128 = arith.addf %127, %126 : vector<2x128xf32>
    %129 = arith.divf %127, %128 : vector<2x128xf32>
    %130 = math.tanh %124 : vector<2x128xf32>
    %131 = vector.extract_strided_slice %129 {offsets = [0, 32], sizes = [2, 32], strides = [1, 1]} : vector<2x128xf32> to vector<2x32xf32>
    %132 = arith.mulf %131, %114 : vector<2x32xf32>
    %133 = vector.extract_strided_slice %129 {offsets = [0, 0], sizes = [2, 32], strides = [1, 1]} : vector<2x128xf32> to vector<2x32xf32>
    %134 = vector.extract_strided_slice %130 {offsets = [0, 64], sizes = [2, 32], strides = [1, 1]} : vector<2x128xf32> to vector<2x32xf32>
    %135 = arith.mulf %133, %134 : vector<2x32xf32>
    %136 = arith.addf %132, %135 : vector<2x32xf32>
    %137 = vector.extract_strided_slice %129 {offsets = [0, 96], sizes = [2, 32], strides = [1, 1]} : vector<2x128xf32> to vector<2x32xf32>
    %138 = math.tanh %136 : vector<2x32xf32>
    %139 = arith.mulf %137, %138 : vector<2x32xf32>
    %c0_33 = arith.constant 0 : index
    %c5 = arith.constant 5 : index
    %c0_34 = arith.constant 0 : index
    %140 = vector.load %arg7[%c0_33, %c5, %c0_34] : memref<2x8x32xf32, #tpu.memory_space<vmem>>, vector<2x1x32xf32>
    %141 = vector.shape_cast %140 : vector<2x1x32xf32> to vector<2x32xf32>
    %142 = vector.shape_cast %139 : vector<2x32xf32> to vector<2x1x32xf32>
    tpu.vector_store %arg7[%c0_33, %c5, %c0_34], %142 {strides = array<i32>} : memref<2x8x32xf32, #tpu.memory_space<vmem>>, vector<2x1x32xf32>,
    %143 = vector.extract_strided_slice %8 {offsets = [0, 6, 0], sizes = [2, 1, 128], strides = [1, 1, 1]} : vector<2x8x128xf32> to vector<2x1x128xf32>
    %144 = vector.shape_cast %143 : vector<2x1x128xf32> to vector<2x128xf32>
    %cst_35 = arith.constant dense<0.000000e+00> : vector<2x128xf32>
    %145 = tpu.matmul %139, %0, %cst_35 {dimension_numbers = #tpu.dot_dimension_numbers<[1], [0], [0], [1], [0, 0, 1, 1], [], []>} : vector<2x32xf32>, vector<32x128xf32>, vector<2x128xf32> -> vector<2x128xf32>
    %146 = arith.addf %144, %145 : vector<2x128xf32>
    %147 = arith.negf %146 : vector<2x128xf32>
    %148 = math.exp %147 : vector<2x128xf32>
    %cst_36 = arith.constant 1.000000e+00 : f32
    %149 = vector.broadcast %cst_36 : f32 to vector<2x128xf32>
    %150 = arith.addf %149, %148 : vector<2x128xf32>
    %151 = arith.divf %149, %150 : vector<2x128xf32>
    %152 = math.tanh %146 : vector<2x128xf32>
    %153 = vector.extract_strided_slice %151 {offsets = [0, 32], sizes = [2, 32], strides = [1, 1]} : vector<2x128xf32> to vector<2x32xf32>
    %154 = arith.mulf %153, %136 : vector<2x32xf32>
    %155 = vector.extract_strided_slice %151 {offsets = [0, 0], sizes = [2, 32], strides = [1, 1]} : vector<2x128xf32> to vector<2x32xf32>
    %156 = vector.extract_strided_slice %152 {offsets = [0, 64], sizes = [2, 32], strides = [1, 1]} : vector<2x128xf32> to vector<2x32xf32>
    %157 = arith.mulf %155, %156 : vector<2x32xf32>
    %158 = arith.addf %154, %157 : vector<2x32xf32>
    %159 = vector.extract_strided_slice %151 {offsets = [0, 96], sizes = [2, 32], strides = [1, 1]} : vector<2x128xf32> to vector<2x32xf32>
    %160 = math.tanh %158 : vector<2x32xf32>
    %161 = arith.mulf %159, %160 : vector<2x32xf32>
    %c0_37 = arith.constant 0 : index
    %c6 = arith.constant 6 : index
    %c0_38 = arith.constant 0 : index
    %162 = vector.load %arg7[%c0_37, %c6, %c0_38] : memref<2x8x32xf32, #tpu.memory_space<vmem>>, vector<2x1x32xf32>
    %163 = vector.shape_cast %162 : vector<2x1x32xf32> to vector<2x32xf32>
    %164 = vector.shape_cast %161 : vector<2x32xf32> to vector<2x1x32xf32>
    tpu.vector_store %arg7[%c0_37, %c6, %c0_38], %164 {strides = array<i32>} : memref<2x8x32xf32, #tpu.memory_space<vmem>>, vector<2x1x32xf32>,
    %165 = vector.extract_strided_slice %8 {offsets = [0, 7, 0], sizes = [2, 1, 128], strides = [1, 1, 1]} : vector<2x8x128xf32> to vector<2x1x128xf32>
    %166 = vector.shape_cast %165 : vector<2x1x128xf32> to vector<2x128xf32>
    %cst_39 = arith.constant dense<0.000000e+00> : vector<2x128xf32>
    %167 = tpu.matmul %161, %0, %cst_39 {dimension_numbers = #tpu.dot_dimension_numbers<[1], [0], [0], [1], [0, 0, 1, 1], [], []>} : vector<2x32xf32>, vector<32x128xf32>, vector<2x128xf32> -> vector<2x128xf32>
    %168 = arith.addf %166, %167 : vector<2x128xf32>
    %169 = arith.negf %168 : vector<2x128xf32>
    %170 = math.exp %169 : vector<2x128xf32>
    %cst_40 = arith.constant 1.000000e+00 : f32
    %171 = vector.broadcast %cst_40 : f32 to vector<2x128xf32>
    %172 = arith.addf %171, %170 : vector<2x128xf32>
    %173 = arith.divf %171, %172 : vector<2x128xf32>
    %174 = math.tanh %168 : vector<2x128xf32>
    %175 = vector.extract_strided_slice %173 {offsets = [0, 32], sizes = [2, 32], strides = [1, 1]} : vector<2x128xf32> to vector<2x32xf32>
    %176 = arith.mulf %175, %158 : vector<2x32xf32>
    %177 = vector.extract_strided_slice %173 {offsets = [0, 0], sizes = [2, 32], strides = [1, 1]} : vector<2x128xf32> to vector<2x32xf32>
    %178 = vector.extract_strided_slice %174 {offsets = [0, 64], sizes = [2, 32], strides = [1, 1]} : vector<2x128xf32> to vector<2x32xf32>
    %179 = arith.mulf %177, %178 : vector<2x32xf32>
    %180 = arith.addf %176, %179 : vector<2x32xf32>
    %181 = vector.extract_strided_slice %173 {offsets = [0, 96], sizes = [2, 32], strides = [1, 1]} : vector<2x128xf32> to vector<2x32xf32>
    %182 = math.tanh %180 : vector<2x32xf32>
    %183 = arith.mulf %181, %182 : vector<2x32xf32>
    %c0_41 = arith.constant 0 : index
    %c7 = arith.constant 7 : index
    %c0_42 = arith.constant 0 : index
    %184 = vector.load %arg7[%c0_41, %c7, %c0_42] : memref<2x8x32xf32, #tpu.memory_space<vmem>>, vector<2x1x32xf32>
    %185 = vector.shape_cast %184 : vector<2x1x32xf32> to vector<2x32xf32>
    %186 = vector.shape_cast %183 : vector<2x32xf32> to vector<2x1x32xf32>
    tpu.vector_store %arg7[%c0_41, %c7, %c0_42], %186 {strides = array<i32>} : memref<2x8x32xf32, #tpu.memory_space<vmem>>, vector<2x1x32xf32>,
    %c0_43 = arith.constant 0 : index
    %c0_44 = arith.constant 0 : index
    %c0_45 = arith.constant 0 : index
    %187 = vector.load %arg7[%c0_43, %c0_44, %c0_45] : memref<2x8x32xf32, #tpu.memory_space<vmem>>, vector<2x8x32xf32>
    %188 = vector.shape_cast %187 : vector<2x8x32xf32> to vector<16x32xf32>
    %c0_46 = arith.constant 0 : index
    %c0_47 = arith.constant 0 : index
    %189 = vector.load %arg4[%c0_46, %c0_47] : memref<32x32xf32, #tpu.memory_space<vmem>>, vector<32x32xf32>
    %cst_48 = arith.constant dense<0.000000e+00> : vector<16x32xf32>
    %190 = tpu.matmul %188, %189, %cst_48 {dimension_numbers = #tpu.dot_dimension_numbers<[1], [0], [0], [1], [0, 0, 1, 1], [], []>} : vector<16x32xf32>, vector<32x32xf32>, vector<16x32xf32> -> vector<16x32xf32>
    %c0_49 = arith.constant 0 : index
    %c0_50 = arith.constant 0 : index
    %191 = vector.load %arg5[%c0_49, %c0_50] : memref<1x32xf32, #tpu.memory_space<vmem>>, vector<1x32xf32>
    %192 = vector.broadcast %191 : vector<1x32xf32> to vector<16x32xf32>
    %193 = arith.addf %190, %192 : vector<16x32xf32>
    %cst_51 = arith.constant 0.000000e+00 : f32
    %194 = vector.broadcast %cst_51 : f32 to vector<16x32xf32>
    %195 = arith.maximumf %193, %194 : vector<16x32xf32>
    %196 = vector.shape_cast %195 : vector<16x32xf32> to vector<2x8x32xf32>
    %c0_52 = arith.constant 0 : index
    %c0_53 = arith.constant 0 : index
    %c0_54 = arith.constant 0 : index
    %197 = vector.load %arg6[%c0_52, %c0_53, %c0_54] : memref<2x8x32xf32, #tpu.memory_space<vmem>>, vector<2x8x32xf32>
    tpu.vector_store %arg6[%c0_52, %c0_53, %c0_54], %196 {strides = array<i32>} : memref<2x8x32xf32, #tpu.memory_space<vmem>>, vector<2x8x32xf32>,
    return
  }
}

</mosaic_0001>

<llo_original>
// kernel: tpu_custom_call.1
$region0: #{tpu_custom_call.1}
  #allocation0 [shape = 'u32[]', space=smem, size = 0x4, offset = 0x4, fixed_abs, tag = 'smem constant byte address 0x4 - core index']
  #allocation1 [shape = 'u32[144,128]{1,0:T(1,128)}', space=vmem, size = 0x12000, scoped, tag = 'internal scratch']
  #allocation2 [shape = 'f32[2,8,32]{2,1,0:T(8,128)}', space=vmem, size = 0x2000, scoped, tag = 'scratch operand']
  %s0 = inlined_call_operand.hbm [shape: f32[2,8,32], index: 0, kind: input, shape index: {}]
  %s1 = inlined_call_operand.hbm [shape: f32[32,128], index: 1, kind: input, shape index: {}]
  %s2 = inlined_call_operand.hbm [shape: f32[32,128], index: 2, kind: input, shape index: {}]
  %s3 = inlined_call_operand.vmem [shape: f32[1,128], index: 3, kind: input, shape index: {}]
  %s4 = inlined_call_operand.hbm [shape: f32[32,32], index: 4, kind: input, shape index: {}]
  %s5 = inlined_call_operand.vmem [shape: f32[1,32], index: 5, kind: input, shape index: {}]
  %s6 = inlined_call_operand.hbm [shape: f32[2,8,32], index: 6, kind: output, shape index: {}]
  %s7 = sld [smem:[#allocation0]]
  $region50: #{tpu_custom_call.1} parent=0
    _
  %s9 = ssub.s32 1, %s7
  %s10 = scalar_select 0, %s9, %s7
  $region1: #{tpu_custom_call.1} parent=0
    #allocation3 [shape = 'u8[8192]{0}', space=vmem, size = 0x2000, scoped, tag = 'input window, operand 0, single buffered']
    #allocation4 [shape = 's32[1]{0}', space=sflag, size = 0x4, scoped, tag = 'scoped memory for tpu_custom_call.1']
    #allocation5 [shape = 's32[1]{0}', space=sflag, size = 0x4, scoped, tag = 'scoped memory for tpu_custom_call.1']
    #allocation6 [shape = 'u8[16384]{0}', space=vmem, size = 0x4000, scoped, tag = 'input window, operand 1, single buffered']
    #allocation7 [shape = 's32[1]{0}', space=sflag, size = 0x4, scoped, tag = 'scoped memory for tpu_custom_call.1']
    #allocation8 [shape = 'u8[16384]{0}', space=vmem, size = 0x4000, scoped, tag = 'input window, operand 2, single buffered']
    #allocation9 [shape = 'u8[16384]{0}', space=vmem, size = 0x4000, scoped, tag = 'input window, operand 4, single buffered']
    #allocation10 [shape = 's32[1]{0}', space=sflag, size = 0x4, scoped, tag = 'scoped memory for tpu_custom_call.1']
    #allocation11 [shape = 'u8[8192]{0}', space=vmem, size = 0x2000, scoped, tag = 'output window, operand 0, single buffered']
    %11 = vsyncpa [#allocation4], 0
    %12 = vsyncpa [#allocation7], 0
    %13 = vsyncpa [#allocation10], 0
    %14 = vsyncpa [#allocation5], 0
    // Predicated region
    $region2: #{tpu_custom_call.1} parent=1 // pred_check
      _
    $region3: #{tpu_custom_call.1} parent=1 // pred_check_branch
      %16 = sbr.rel (0) target = $region5
    $region4: #{tpu_custom_call.1} parent=1 // pred_region
      %s18 = ssub.s32 256, 256
      %19 = vsyncadd [#allocation4], %s18
      %s20 = sshll.u32 [#allocation3], 4
      %s21 = int_to_ptr.vmem [resolvable:$true] %s20
      %26 = dma.hbm_to_vmem [thread:$0]  %s0, 256, %s21, [#allocation4], 128, 128, 8
    $region5: #{tpu_custom_call.1} parent=1 // pred_fallthru
      _
    // Predicated region
    $region6: #{tpu_custom_call.1} parent=1 // pred_check
      _
    $region7: #{tpu_custom_call.1} parent=1 // pred_check_branch
      %28 = sbr.rel (0) target = $region9
    $region8: #{tpu_custom_call.1} parent=1 // pred_region
      %s30 = ssub.s32 512, 512
      %31 = vsyncadd [#allocation7], %s30
      %s32 = sshll.u32 [#allocation6], 4
      %s33 = int_to_ptr.vmem [resolvable:$true] %s32
      %38 = dma.hbm_to_vmem [thread:$0]  %s1, 512, %s33, [#allocation7], 128, 128, 8
    $region9: #{tpu_custom_call.1} parent=1 // pred_fallthru
      _
    // Predicated region
    $region10: #{tpu_custom_call.1} parent=1 // pred_check
      _
    $region11: #{tpu_custom_call.1} parent=1 // pred_check_branch
      %40 = sbr.rel (0) target = $region13
    $region12: #{tpu_custom_call.1} parent=1 // pred_region
      %s42 = ssub.s32 512, 512
      %43 = vsyncadd [#allocation7], %s42
      %s44 = sshll.u32 [#allocation8], 4
      %s45 = int_to_ptr.vmem [resolvable:$true] %s44
      %50 = dma.hbm_to_vmem [thread:$0]  %s2, 512, %s45, [#allocation7], 128, 128, 8
    $region13: #{tpu_custom_call.1} parent=1 // pred_fallthru
      _
    // Predicated region
    $region14: #{tpu_custom_call.1} parent=1 // pred_check
      _
    $region15: #{tpu_custom_call.1} parent=1 // pred_check_branch
      %52 = sbr.rel (0) target = $region17
    $region16: #{tpu_custom_call.1} parent=1 // pred_region
      _
    $region17: #{tpu_custom_call.1} parent=1 // pred_fallthru
      _
    // Predicated region
    $region18: #{tpu_custom_call.1} parent=1 // pred_check
      _
    $region19: #{tpu_custom_call.1} parent=1 // pred_check_branch
      %54 = sbr.rel (0) target = $region21
    $region20: #{tpu_custom_call.1} parent=1 // pred_region
      %s56 = ssub.s32 512, 512
      %57 = vsyncadd [#allocation10], %s56
      %s58 = sshll.u32 [#allocation9], 4
      %s59 = int_to_ptr.vmem [resolvable:$true] %s58
      %64 = dma.hbm_to_vmem [thread:$0]  %s4, 512, %s59, [#allocation10], 128, 128, 8
    $region21: #{tpu_custom_call.1} parent=1 // pred_fallthru
      _
    // Predicated region
    $region22: #{tpu_custom_call.1} parent=1 // pred_check
      _
    $region23: #{tpu_custom_call.1} parent=1 // pred_check_branch
      %66 = sbr.rel (0) target = $region25
    $region24: #{tpu_custom_call.1} parent=1 // pred_region
      _
    $region25: #{tpu_custom_call.1} parent=1 // pred_fallthru
      _
    // Predicated region
    $region26: #{tpu_custom_call.1} parent=1 // pred_check
      _
    $region27: #{tpu_custom_call.1} parent=1 // pred_check_branch
      %68 = sbr.rel (0) target = $region29
    $region28: #{tpu_custom_call.1} parent=1 // pred_region
      %69 = dma.done [#allocation4], 256
    $region29: #{tpu_custom_call.1} parent=1 // pred_fallthru
      _
    // Predicated region
    $region30: #{tpu_custom_call.1} parent=1 // pred_check
      _
    $region31: #{tpu_custom_call.1} parent=1 // pred_check_branch
      %71 = sbr.rel (0) target = $region33
    $region32: #{tpu_custom_call.1} parent=1 // pred_region
      %72 = dma.done [#allocation7], 512
    $region33: #{tpu_custom_call.1} parent=1 // pred_fallthru
      _
    // Predicated region
    $region34: #{tpu_custom_call.1} parent=1 // pred_check
      _
    $region35: #{tpu_custom_call.1} parent=1 // pred_check_branch
      %74 = sbr.rel (0) target = $region37
    $region36: #{tpu_custom_call.1} parent=1 // pred_region
      %75 = dma.done [#allocation7], 512
    $region37: #{tpu_custom_call.1} parent=1 // pred_fallthru
      _
    // Predicated region
    $region38: #{tpu_custom_call.1} parent=1 // pred_check
      _
    $region39: #{tpu_custom_call.1} parent=1 // pred_check_branch
      %77 = sbr.rel (0) target = $region41
    $region40: #{tpu_custom_call.1} parent=1 // pred_region
      %78 = dma.done [#allocation10], 512
    $region41: #{tpu_custom_call.1} parent=1 // pred_fallthru
      _
    %v79 = vld [vmem:[#allocation8] sm:$0xff]
    %v80 = vld [vmem:[#allocation8 + $0x8] sm:$0xff]
    %v81 = vld [vmem:[#allocation8 + $0x10] sm:$0xff]
    %v82 = vld [vmem:[#allocation8 + $0x18] sm:$0xff]
    %v83 = vld [vmem:[#allocation3] sm:$0xff]
    %v84 = vld [vmem:[#allocation3 + $0x8] sm:$0xff]
    %v85 = vld [vmem:[#allocation6] sm:$0xff]
    %v86 = vld [vmem:[#allocation6 + $0x8] sm:$0xff]
    %v87 = vld [vmem:[#allocation6 + $0x10] sm:$0xff]
    %v88 = vld [vmem:[#allocation6 + $0x18] sm:$0xff]
    %v89 = vld [vmem:[%s3] sm:$0x1]
    %v91 = vlaneseq
    %v92 = vshrl.u32 %v91, 7
    %v93 = vsub.s32 0, %v92
    %v94 = vrot.slane %v89, %v93
    %vm96 = vcmask 261120
    %v98 = vsel %vm96, %v83, 0
    %v101 = vsel %vm96, %v84, 0
    %103 = vmatprep.subr.mxu0 0.0
    %104 = vmatpush1.msra.mxu0 0.0
    %105 = vmatprep.subr.mxu0 0.0
    %106 = vmatpush1.msra.mxu0 0.0
    %107 = vmatprep.subr.mxu0 0.0
    %108 = vmatpush1.msra.mxu0 0.0
    %109 = vmatprep.subr.mxu0 0.0
    %110 = vmatpush1.msra.mxu0 0.0
    %111 = vmatprep.subr.mxu0 0.0
    %112 = vmatpush1.msra.mxu0 0.0
    %113 = vmatprep.subr.mxu0 0.0
    %114 = vmatpush1.msra.mxu0 0.0
    %115 = vmatprep.subr.mxu0 0.0
    %116 = vmatpush1.msra.mxu0 0.0
    %117 = vmatprep.subr.mxu0 0.0
    %118 = vmatpush1.msra.mxu0 0.0
    %119 = vmatprep.subr.mxu0 0.0
    %120 = vmatpush1.msra.mxu0 0.0
    %121 = vmatprep.subr.mxu0 0.0
    %122 = vmatpush1.msra.mxu0 0.0
    %123 = vmatprep.subr.mxu0 0.0
    %124 = vmatpush1.msra.mxu0 0.0
    %125 = vmatprep.subr.mxu0 0.0
    %126 = vmatpush1.msra.mxu0 0.0
    %127 = vmatprep.subr.mxu0 0.0
    %128 = vmatpush1.msra.mxu0 %v88
    %129 = vmatprep.subr.mxu0 0.0
    %130 = vmatpush1.msra.mxu0 %v87
    %131 = vmatprep.subr.mxu0 0.0
    %132 = vmatpush1.msra.mxu0 %v86
    %133 = vmatprep.subr.mxu0 0.0
    %134 = vmatpush1.msra.mxu0 %v85
    %135 = vmatprep.subr.mxu0 0.0
    %136 = vmatpush2.msra.mxu0 0.0
    %137 = vmatprep.subr.mxu0 0.0
    %138 = vmatpush2.msra.mxu0 0.0
    %139 = vmatprep.subr.mxu0 0.0
    %140 = vmatpush2.msra.mxu0 0.0
    %141 = vmatprep.subr.mxu0 0.0
    %142 = vmatpush2.msra.mxu0 0.0
    %143 = vmatprep.subr.mxu0 0.0
    %144 = vmatpush2.msra.mxu0 0.0
    %145 = vmatprep.subr.mxu0 0.0
    %146 = vmatpush2.msra.mxu0 0.0
    %147 = vmatprep.subr.mxu0 0.0
    %148 = vmatpush2.msra.mxu0 0.0
    %149 = vmatprep.subr.mxu0 0.0
    %150 = vmatpush2.msra.mxu0 0.0
    %151 = vmatprep.subr.mxu0 0.0
    %152 = vmatpush2.msra.mxu0 0.0
    %153 = vmatprep.subr.mxu0 0.0
    %154 = vmatpush2.msra.mxu0 0.0
    %155 = vmatprep.subr.mxu0 0.0
    %156 = vmatpush2.msra.mxu0 0.0
    %157 = vmatprep.subr.mxu0 0.0
    %158 = vmatpush2.msra.mxu0 0.0
    %159 = vmatprep.subr.mxu0 0.0
    %160 = vmatpush2.msra.mxu0 0.0
    %161 = vmatprep.subr.mxu0 0.0
    %162 = vmatpush2.msra.mxu0 0.0
    %163 = vmatprep.subr.mxu0 0.0
    %164 = vmatpush2.msra.mxu0 0.0
    %165 = vmatprep.subr.mxu0 0.0
    %166 = vmatpush2.msra.mxu0 0.0
    %167 = vmatprep.mubr.f32.mxu0 0.0
    %168 = vmatmul.mubr.f32.gmra.mxu0 %v98
    %v169 = vpop.f32.mrf.mxu0
    %v170 = vadd.f32 %v94, %v169
    %v171 = vpop.f32.mrf.mxu0
    %172 = vmatprep.mubr.f32.mxu0 0.0
    %173 = vmatmul.mubr.f32.gmra.mxu0 %v101
    %v174 = vpop.f32.mrf.mxu0
    %v175 = vadd.f32 %v94, %v174
    %v176 = vpop.f32.mrf.mxu0
    %177 = vdwg.mxu0
    %v179 = vsel %vm96, 0.0, 0
    %181 = vmatprep.subr.mxu0 0.0
    %182 = vmatpush1.msra.mxu0 0.0
    %183 = vmatprep.subr.mxu0 0.0
    %184 = vmatpush1.msra.mxu0 0.0
    %185 = vmatprep.subr.mxu0 0.0
    %186 = vmatpush1.msra.mxu0 0.0
    %187 = vmatprep.subr.mxu0 0.0
    %188 = vmatpush1.msra.mxu0 0.0
    %189 = vmatprep.subr.mxu0 0.0
    %190 = vmatpush1.msra.mxu0 0.0
    %191 = vmatprep.subr.mxu0 0.0
    %192 = vmatpush1.msra.mxu0 0.0
    %193 = vmatprep.subr.mxu0 0.0
    %194 = vmatpush1.msra.mxu0 0.0
    %195 = vmatprep.subr.mxu0 0.0
    %196 = vmatpush1.msra.mxu0 0.0
    %197 = vmatprep.subr.mxu0 0.0
    %198 = vmatpush1.msra.mxu0 0.0
    %199 = vmatprep.subr.mxu0 0.0
    %200 = vmatpush1.msra.mxu0 0.0
    %201 = vmatprep.subr.mxu0 0.0
    %202 = vmatpush1.msra.mxu0 0.0
    %203 = vmatprep.subr.mxu0 0.0
    %204 = vmatpush1.msra.mxu0 0.0
    %205 = vmatprep.subr.mxu0 0.0
    %206 = vmatpush1.msra.mxu0 %v82
    %207 = vmatprep.subr.mxu0 0.0
    %208 = vmatpush1.msra.mxu0 %v81
    %209 = vmatprep.subr.mxu0 0.0
    %210 = vmatpush1.msra.mxu0 %v80
    %211 = vmatprep.subr.mxu0 0.0
    %212 = vmatpush1.msra.mxu0 %v79
    %213 = vmatprep.subr.mxu0 0.0
    %214 = vmatpush2.msra.mxu0 0.0
    %215 = vmatprep.subr.mxu0 0.0
    %216 = vmatpush2.msra.mxu0 0.0
    %217 = vmatprep.subr.mxu0 0.0
    %218 = vmatpush2.msra.mxu0 0.0
    %219 = vmatprep.subr.mxu0 0.0
    %220 = vmatpush2.msra.mxu0 0.0
    %221 = vmatprep.subr.mxu0 0.0
    %222 = vmatpush2.msra.mxu0 0.0
    %223 = vmatprep.subr.mxu0 0.0
    %224 = vmatpush2.msra.mxu0 0.0
    %225 = vmatprep.subr.mxu0 0.0
    %226 = vmatpush2.msra.mxu0 0.0
    %227 = vmatprep.subr.mxu0 0.0
    %228 = vmatpush2.msra.mxu0 0.0
    %229 = vmatprep.subr.mxu0 0.0
    %230 = vmatpush2.msra.mxu0 0.0
    %231 = vmatprep.subr.mxu0 0.0
    %232 = vmatpush2.msra.mxu0 0.0
    %233 = vmatprep.subr.mxu0 0.0
    %234 = vmatpush2.msra.mxu0 0.0
    %235 = vmatprep.subr.mxu0 0.0
    %236 = vmatpush2.msra.mxu0 0.0
    %237 = vmatprep.subr.mxu0 0.0
    %238 = vmatpush2.msra.mxu0 0.0
    %239 = vmatprep.subr.mxu0 0.0
    %240 = vmatpush2.msra.mxu0 0.0
    %241 = vmatprep.subr.mxu0 0.0
    %242 = vmatpush2.msra.mxu0 0.0
    %243 = vmatprep.subr.mxu0 0.0
    %244 = vmatpush2.msra.mxu0 0.0
    %245 = vmatprep.mubr.f32.mxu0 0.0
    %246 = vmatmul.mubr.f32.gmra.mxu0 %v179
    %v247 = vpop.f32.mrf.mxu0
    %v248 = vadd.f32 0.0, %v247
    %v249 = vpop.f32.mrf.mxu0
    %250 = vdwg.mxu0
    %v252 = vrot.slane %v248, 1
    %v255 = vadd.f32 %v170, %v248
    %v256 = vadd.f32 %v175, %v252
    %v257 = vxor.u32 %v255, 2147483648
    %v258 = vxor.u32 %v256, 2147483648
    %v259 = vmul.f32 %v257, 1.442695
    %v260 = vpow.pop %v259
    %v261 = vmul.f32 %v258, 1.442695
    %v262 = vpow.pop %v261
    %v263 = vadd.f32 %v260, 1.0
    %v264 = vadd.f32 %v262, 1.0
    %v265 = vrcp.pop %v263
    %v266 = vmul.f32 1.0, %v265
    %v267 = vrcp.pop %v264
    %v268 = vmul.f32 1.0, %v267
    %v269 = vtanh.pop %v255
    %v270 = vtanh.pop %v256
    %v271 = vmul.f32 %v266, 0.0
    %v272 = vmul.f32 %v268, 0.0
    %275 = vrot.lane.b32.xlu0 %v269, 64
    %v276 = vpop.permute.xlu0 %275
    %277 = vrot.lane.b32.xlu0 %v270, 64
    %v278 = vpop.permute.xlu0 %277
    %v281 = vmul.f32 %v266, %v276
    %v282 = vmul.f32 %v268, %v278
    %285 = vrot.lane.b32.xlu0 %v281, 32
    %v286 = vpop.permute.xlu0 %285
    %287 = vrot.lane.b32.xlu0 %v282, 32
    %v288 = vpop.permute.xlu0 %287
    %v291 = vadd.f32 %v271, %v286
    %v292 = vadd.f32 %v272, %v288
    %v293 = vtanh.pop %v291
    %v294 = vtanh.pop %v292
    %297 = vrot.lane.b32.xlu0 %v293, 64
    %v298 = vpop.permute.xlu0 %297
    %299 = vrot.lane.b32.xlu0 %v294, 64
    %v300 = vpop.permute.xlu0 %299
    %v303 = vmul.f32 %v266, %v298
    %v304 = vmul.f32 %v268, %v300
    %307 = vrot.lane.b32.xlu0 %v303, 32
    %v308 = vpop.permute.xlu0 %307
    %309 = vrot.lane.b32.xlu0 %v304, 32
    %v310 = vpop.permute.xlu0 %309
    %vm313 = vcmask 253952
    %314 = vst.msk [vmem:[#allocation2] sm:$0x1] %vm313, %v308
    %315 = vst.msk [vmem:[#allocation2 + $0x8] sm:$0x1] %vm313, %v310
    %v316 = vrot.slane %v304, 7
    %vm317 = vcmask 1041409
    %v318 = vsel %vm317, %v316, %v303
    %319 = vrot.lane.b32.xlu0 %v318, 32
    %v320 = vpop.permute.xlu0 %319
    %v321 = vsel %vm96, %v320, 0
    %323 = vmatprep.subr.mxu0 0.0
    %324 = vmatpush1.msra.mxu0 0.0
    %325 = vmatprep.subr.mxu0 0.0
    %326 = vmatpush1.msra.mxu0 0.0
    %327 = vmatprep.subr.mxu0 0.0
    %328 = vmatpush1.msra.mxu0 0.0
    %329 = vmatprep.subr.mxu0 0.0
    %330 = vmatpush1.msra.mxu0 0.0
    %331 = vmatprep.subr.mxu0 0.0
    %332 = vmatpush1.msra.mxu0 0.0
    %333 = vmatprep.subr.mxu0 0.0
    %334 = vmatpush1.msra.mxu0 0.0
    %335 = vmatprep.subr.mxu0 0.0
    %336 = vmatpush1.msra.mxu0 0.0
    %337 = vmatprep.subr.mxu0 0.0
    %338 = vmatpush1.msra.mxu0 0.0
    %339 = vmatprep.subr.mxu0 0.0
    %340 = vmatpush1.msra.mxu0 0.0
    %341 = vmatprep.subr.mxu0 0.0
    %342 = vmatpush1.msra.mxu0 0.0
    %343 = vmatprep.subr.mxu0 0.0
    %344 = vmatpush1.msra.mxu0 0.0
    %345 = vmatprep.subr.mxu0 0.0
    %346 = vmatpush1.msra.mxu0 0.0
    %347 = vmatprep.subr.mxu0 0.0
    %348 = vmatpush1.msra.mxu0 %v82
    %349 = vmatprep.subr.mxu0 0.0
    %350 = vmatpush1.msra.mxu0 %v81
    %351 = vmatprep.subr.mxu0 0.0
    %352 = vmatpush1.msra.mxu0 %v80
    %353 = vmatprep.subr.mxu0 0.0
    %354 = vmatpush1.msra.mxu0 %v79
    %355 = vmatprep.subr.mxu0 0.0
    %356 = vmatpush2.msra.mxu0 0.0
    %357 = vmatprep.subr.mxu0 0.0
    %358 = vmatpush2.msra.mxu0 0.0
    %359 = vmatprep.subr.mxu0 0.0
    %360 = vmatpush2.msra.mxu0 0.0
    %361 = vmatprep.subr.mxu0 0.0
    %362 = vmatpush2.msra.mxu0 0.0
    %363 = vmatprep.subr.mxu0 0.0
    %364 = vmatpush2.msra.mxu0 0.0
    %365 = vmatprep.subr.mxu0 0.0
    %366 = vmatpush2.msra.mxu0 0.0
    %367 = vmatprep.subr.mxu0 0.0
    %368 = vmatpush2.msra.mxu0 0.0
    %369 = vmatprep.subr.mxu0 0.0
    %370 = vmatpush2.msra.mxu0 0.0
    %371 = vmatprep.subr.mxu0 0.0
    %372 = vmatpush2.msra.mxu0 0.0
    %373 = vmatprep.subr.mxu0 0.0
    %374 = vmatpush2.msra.mxu0 0.0
    %375 = vmatprep.subr.mxu0 0.0
    %376 = vmatpush2.msra.mxu0 0.0
    %377 = vmatprep.subr.mxu0 0.0
    %378 = vmatpush2.msra.mxu0 0.0
    %379 = vmatprep.subr.mxu0 0.0
    %380 = vmatpush2.msra.mxu0 0.0
    %381 = vmatprep.subr.mxu0 0.0
    %382 = vmatpush2.msra.mxu0 0.0
    %383 = vmatprep.subr.mxu0 0.0
    %384 = vmatpush2.msra.mxu0 0.0
    %385 = vmatprep.subr.mxu0 0.0
    %386 = vmatpush2.msra.mxu0 0.0
    %387 = vmatprep.mubr.f32.mxu0 0.0
    %388 = vmatmul.mubr.f32.gmra.mxu0 %v321
    %v389 = vpop.f32.mrf.mxu0
    %v390 = vadd.f32 0.0, %v389
    %v391 = vpop.f32.mrf.mxu0
    %392 = vdwg.mxu0
    %v394 = vrot.slane %v390, 7
    %v397 = vadd.f32 %v170, %v394
    %v398 = vadd.f32 %v175, %v390
    %v399 = vxor.u32 %v397, 2147483648
    %v400 = vxor.u32 %v398, 2147483648
    %v401 = vmul.f32 %v399, 1.442695
    %v402 = vpow.pop %v401
    %v403 = vmul.f32 %v400, 1.442695
    %v404 = vpow.pop %v403
    %v405 = vadd.f32 %v402, 1.0
    %v406 = vadd.f32 %v404, 1.0
    %v407 = vrcp.pop %v405
    %v408 = vmul.f32 1.0, %v407
    %v409 = vrcp.pop %v406
    %v410 = vmul.f32 1.0, %v409
    %v411 = vtanh.pop %v397
    %v412 = vtanh.pop %v398
    %v415 = vrot.slane %v291, 7
    %v416 = vrot.slane %v292, 7
    %v419 = vmul.f32 %v408, %v415
    %v420 = vmul.f32 %v410, %v416
    %423 = vrot.lane.b32.xlu0 %v411, 64
    %v424 = vpop.permute.xlu0 %423
    %425 = vrot.lane.b32.xlu0 %v412, 64
    %v426 = vpop.permute.xlu0 %425
    %v429 = vmul.f32 %v408, %v424
    %v430 = vmul.f32 %v410, %v426
    %433 = vrot.lane.b32.xlu0 %v429, 32
    %v434 = vpop.permute.xlu0 %433
    %435 = vrot.lane.b32.xlu0 %v430, 32
    %v436 = vpop.permute.xlu0 %435
    %v439 = vadd.f32 %v419, %v434
    %v440 = vadd.f32 %v420, %v436
    %v441 = vtanh.pop %v439
    %v442 = vtanh.pop %v440
    %445 = vrot.lane.b32.xlu0 %v441, 64
    %v446 = vpop.permute.xlu0 %445
    %447 = vrot.lane.b32.xlu0 %v442, 64
    %v448 = vpop.permute.xlu0 %447
    %v451 = vmul.f32 %v408, %v446
    %v452 = vmul.f32 %v410, %v448
    %455 = vrot.lane.b32.xlu0 %v451, 32
    %v456 = vpop.permute.xlu0 %455
    %457 = vrot.lane.b32.xlu0 %v452, 32
    %v458 = vpop.permute.xlu0 %457
    %vm461 = vcmask 254977
    %462 = vst.msk [vmem:[#allocation2] sm:$0x2] %vm461, %v456
    %463 = vst.msk [vmem:[#allocation2 + $0x8] sm:$0x2] %vm461, %v458
    %v464 = vrot.slane %v451, 1
    %v465 = vsel %vm317, %v452, %v464
    %466 = vrot.lane.b32.xlu0 %v465, 32
    %v467 = vpop.permute.xlu0 %466
    %v468 = vsel %vm96, %v467, 0
    %470 = vmatprep.subr.mxu0 0.0
    %471 = vmatpush1.msra.mxu0 0.0
    %472 = vmatprep.subr.mxu0 0.0
    %473 = vmatpush1.msra.mxu0 0.0
    %474 = vmatprep.subr.mxu0 0.0
    %475 = vmatpush1.msra.mxu0 0.0
    %476 = vmatprep.subr.mxu0 0.0
    %477 = vmatpush1.msra.mxu0 0.0
    %478 = vmatprep.subr.mxu0 0.0
    %479 = vmatpush1.msra.mxu0 0.0
    %480 = vmatprep.subr.mxu0 0.0
    %481 = vmatpush1.msra.mxu0 0.0
    %482 = vmatprep.subr.mxu0 0.0
    %483 = vmatpush1.msra.mxu0 0.0
    %484 = vmatprep.subr.mxu0 0.0
    %485 = vmatpush1.msra.mxu0 0.0
    %486 = vmatprep.subr.mxu0 0.0
    %487 = vmatpush1.msra.mxu0 0.0
    %488 = vmatprep.subr.mxu0 0.0
    %489 = vmatpush1.msra.mxu0 0.0
    %490 = vmatprep.subr.mxu0 0.0
    %491 = vmatpush1.msra.mxu0 0.0
    %492 = vmatprep.subr.mxu0 0.0
    %493 = vmatpush1.msra.mxu0 0.0
    %494 = vmatprep.subr.mxu0 0.0
    %495 = vmatpush1.msra.mxu0 %v82
    %496 = vmatprep.subr.mxu0 0.0
    %497 = vmatpush1.msra.mxu0 %v81
    %498 = vmatprep.subr.mxu0 0.0
    %499 = vmatpush1.msra.mxu0 %v80
    %500 = vmatprep.subr.mxu0 0.0
    %501 = vmatpush1.msra.mxu0 %v79
    %502 = vmatprep.subr.mxu0 0.0
    %503 = vmatpush2.msra.mxu0 0.0
    %504 = vmatprep.subr.mxu0 0.0
    %505 = vmatpush2.msra.mxu0 0.0
    %506 = vmatprep.subr.mxu0 0.0
    %507 = vmatpush2.msra.mxu0 0.0
    %508 = vmatprep.subr.mxu0 0.0
    %509 = vmatpush2.msra.mxu0 0.0
    %510 = vmatprep.subr.mxu0 0.0
    %511 = vmatpush2.msra.mxu0 0.0
    %512 = vmatprep.subr.mxu0 0.0
    %513 = vmatpush2.msra.mxu0 0.0
    %514 = vmatprep.subr.mxu0 0.0
    %515 = vmatpush2.msra.mxu0 0.0
    %516 = vmatprep.subr.mxu0 0.0
    %517 = vmatpush2.msra.mxu0 0.0
    %518 = vmatprep.subr.mxu0 0.0
    %519 = vmatpush2.msra.mxu0 0.0
    %520 = vmatprep.subr.mxu0 0.0
    %521 = vmatpush2.msra.mxu0 0.0
    %522 = vmatprep.subr.mxu0 0.0
    %523 = vmatpush2.msra.mxu0 0.0
    %524 = vmatprep.subr.mxu0 0.0
    %525 = vmatpush2.msra.mxu0 0.0
    %526 = vmatprep.subr.mxu0 0.0
    %527 = vmatpush2.msra.mxu0 0.0
    %528 = vmatprep.subr.mxu0 0.0
    %529 = vmatpush2.msra.mxu0 0.0
    %530 = vmatprep.subr.mxu0 0.0
    %531 = vmatpush2.msra.mxu0 0.0
    %532 = vmatprep.subr.mxu0 0.0
    %533 = vmatpush2.msra.mxu0 0.0
    %534 = vmatprep.mubr.f32.mxu0 0.0
    %535 = vmatmul.mubr.f32.gmra.mxu0 %v468
    %v536 = vpop.f32.mrf.mxu0
    %v537 = vadd.f32 0.0, %v536
    %v538 = vpop.f32.mrf.mxu0
    %539 = vdwg.mxu0
    %v541 = vrot.slane %v537, 6
    %v542 = vrot.slane %v537, 7
    %v545 = vadd.f32 %v170, %v541
    %v546 = vadd.f32 %v175, %v542
    %v547 = vxor.u32 %v545, 2147483648
    %v548 = vxor.u32 %v546, 2147483648
    %v549 = vmul.f32 %v547, 1.442695
    %v550 = vpow.pop %v549
    %v551 = vmul.f32 %v548, 1.442695
    %v552 = vpow.pop %v551
    %v553 = vadd.f32 %v550, 1.0
    %v554 = vadd.f32 %v552, 1.0
    %v555 = vrcp.pop %v553
    %v556 = vmul.f32 1.0, %v555
    %v557 = vrcp.pop %v554
    %v558 = vmul.f32 1.0, %v557
    %v559 = vtanh.pop %v545
    %v560 = vtanh.pop %v546
    %v563 = vrot.slane %v439, 7
    %v564 = vrot.slane %v440, 7
    %v567 = vmul.f32 %v556, %v563
    %v568 = vmul.f32 %v558, %v564
    %571 = vrot.lane.b32.xlu0 %v559, 64
    %v572 = vpop.permute.xlu0 %571
    %573 = vrot.lane.b32.xlu0 %v560, 64
    %v574 = vpop.permute.xlu0 %573
    %v577 = vmul.f32 %v556, %v572
    %v578 = vmul.f32 %v558, %v574
    %581 = vrot.lane.b32.xlu0 %v577, 32
    %v582 = vpop.permute.xlu0 %581
    %583 = vrot.lane.b32.xlu0 %v578, 32
    %v584 = vpop.permute.xlu0 %583
    %v587 = vadd.f32 %v567, %v582
    %v588 = vadd.f32 %v568, %v584
    %v589 = vtanh.pop %v587
    %v590 = vtanh.pop %v588
    %593 = vrot.lane.b32.xlu0 %v589, 64
    %v594 = vpop.permute.xlu0 %593
    %595 = vrot.lane.b32.xlu0 %v590, 64
    %v596 = vpop.permute.xlu0 %595
    %v599 = vmul.f32 %v556, %v594
    %v600 = vmul.f32 %v558, %v596
    %603 = vrot.lane.b32.xlu0 %v599, 32
    %v604 = vpop.permute.xlu0 %603
    %605 = vrot.lane.b32.xlu0 %v600, 32
    %v606 = vpop.permute.xlu0 %605
    %vm609 = vcmask 256002
    %610 = vst.msk [vmem:[#allocation2] sm:$0x4] %vm609, %v604
    %611 = vst.msk [vmem:[#allocation2 + $0x8] sm:$0x4] %vm609, %v606
    %v612 = vrot.slane %v599, 2
    %v613 = vrot.slane %v600, 1
    %v614 = vsel %vm317, %v613, %v612
    %615 = vrot.lane.b32.xlu0 %v614, 32
    %v616 = vpop.permute.xlu0 %615
    %v617 = vsel %vm96, %v616, 0
    %619 = vmatprep.subr.mxu0 0.0
    %620 = vmatpush1.msra.mxu0 0.0
    %621 = vmatprep.subr.mxu0 0.0
    %622 = vmatpush1.msra.mxu0 0.0
    %623 = vmatprep.subr.mxu0 0.0
    %624 = vmatpush1.msra.mxu0 0.0
    %625 = vmatprep.subr.mxu0 0.0
    %626 = vmatpush1.msra.mxu0 0.0
    %627 = vmatprep.subr.mxu0 0.0
    %628 = vmatpush1.msra.mxu0 0.0
    %629 = vmatprep.subr.mxu0 0.0
    %630 = vmatpush1.msra.mxu0 0.0
    %631 = vmatprep.subr.mxu0 0.0
    %632 = vmatpush1.msra.mxu0 0.0
    %633 = vmatprep.subr.mxu0 0.0
    %634 = vmatpush1.msra.mxu0 0.0
    %635 = vmatprep.subr.mxu0 0.0
    %636 = vmatpush1.msra.mxu0 0.0
    %637 = vmatprep.subr.mxu0 0.0
    %638 = vmatpush1.msra.mxu0 0.0
    %639 = vmatprep.subr.mxu0 0.0
    %640 = vmatpush1.msra.mxu0 0.0
    %641 = vmatprep.subr.mxu0 0.0
    %642 = vmatpush1.msra.mxu0 0.0
    %643 = vmatprep.subr.mxu0 0.0
    %644 = vmatpush1.msra.mxu0 %v82
    %645 = vmatprep.subr.mxu0 0.0
    %646 = vmatpush1.msra.mxu0 %v81
    %647 = vmatprep.subr.mxu0 0.0
    %648 = vmatpush1.msra.mxu0 %v80
    %649 = vmatprep.subr.mxu0 0.0
    %650 = vmatpush1.msra.mxu0 %v79
    %651 = vmatprep.subr.mxu0 0.0
    %652 = vmatpush2.msra.mxu0 0.0
    %653 = vmatprep.subr.mxu0 0.0
    %654 = vmatpush2.msra.mxu0 0.0
    %655 = vmatprep.subr.mxu0 0.0
    %656 = vmatpush2.msra.mxu0 0.0
    %657 = vmatprep.subr.mxu0 0.0
    %658 = vmatpush2.msra.mxu0 0.0
    %659 = vmatprep.subr.mxu0 0.0
    %660 = vmatpush2.msra.mxu0 0.0
    %661 = vmatprep.subr.mxu0 0.0
    %662 = vmatpush2.msra.mxu0 0.0
    %663 = vmatprep.subr.mxu0 0.0
    %664 = vmatpush2.msra.mxu0 0.0
    %665 = vmatprep.subr.mxu0 0.0
    %666 = vmatpush2.msra.mxu0 0.0
    %667 = vmatprep.subr.mxu0 0.0
    %668 = vmatpush2.msra.mxu0 0.0
    %669 = vmatprep.subr.mxu0 0.0
    %670 = vmatpush2.msra.mxu0 0.0
    %671 = vmatprep.subr.mxu0 0.0
    %672 = vmatpush2.msra.mxu0 0.0
    %673 = vmatprep.subr.mxu0 0.0
    %674 = vmatpush2.msra.mxu0 0.0
    %675 = vmatprep.subr.mxu0 0.0
    %676 = vmatpush2.msra.mxu0 0.0
    %677 = vmatprep.subr.mxu0 0.0
    %678 = vmatpush2.msra.mxu0 0.0
    %679 = vmatprep.subr.mxu0 0.0
    %680 = vmatpush2.msra.mxu0 0.0
    %681 = vmatprep.subr.mxu0 0.0
    %682 = vmatpush2.msra.mxu0 0.0
    %683 = vmatprep.mubr.f32.mxu0 0.0
    %684 = vmatmul.mubr.f32.gmra.mxu0 %v617
    %v685 = vpop.f32.mrf.mxu0
    %v686 = vadd.f32 0.0, %v685
    %v687 = vpop.f32.mrf.mxu0
    %688 = vdwg.mxu0
    %v690 = vrot.slane %v686, 5
    %v691 = vrot.slane %v686, 6
    %v694 = vadd.f32 %v170, %v690
    %v695 = vadd.f32 %v175, %v691
    %v696 = vxor.u32 %v694, 2147483648
    %v697 = vxor.u32 %v695, 2147483648
    %v698 = vmul.f32 %v696, 1.442695
    %v699 = vpow.pop %v698
    %v700 = vmul.f32 %v697, 1.442695
    %v701 = vpow.pop %v700
    %v702 = vadd.f32 %v699, 1.0
    %v703 = vadd.f32 %v701, 1.0
    %v704 = vrcp.pop %v702
    %v705 = vmul.f32 1.0, %v704
    %v706 = vrcp.pop %v703
    %v707 = vmul.f32 1.0, %v706
    %v708 = vtanh.pop %v694
    %v709 = vtanh.pop %v695
    %v712 = vrot.slane %v587, 7
    %v713 = vrot.slane %v588, 7
    %v716 = vmul.f32 %v705, %v712
    %v717 = vmul.f32 %v707, %v713
    %720 = vrot.lane.b32.xlu0 %v708, 64
    %v721 = vpop.permute.xlu0 %720
    %722 = vrot.lane.b32.xlu0 %v709, 64
    %v723 = vpop.permute.xlu0 %722
    %v726 = vmul.f32 %v705, %v721
    %v727 = vmul.f32 %v707, %v723
    %730 = vrot.lane.b32.xlu0 %v726, 32
    %v731 = vpop.permute.xlu0 %730
    %732 = vrot.lane.b32.xlu0 %v727, 32
    %v733 = vpop.permute.xlu0 %732
    %v736 = vadd.f32 %v716, %v731
    %v737 = vadd.f32 %v717, %v733
    %v738 = vtanh.pop %v736
    %v739 = vtanh.pop %v737
    %742 = vrot.lane.b32.xlu0 %v738, 64
    %v743 = vpop.permute.xlu0 %742
    %744 = vrot.lane.b32.xlu0 %v739, 64
    %v745 = vpop.permute.xlu0 %744
    %v748 = vmul.f32 %v705, %v743
    %v749 = vmul.f32 %v707, %v745
    %752 = vrot.lane.b32.xlu0 %v748, 32
    %v753 = vpop.permute.xlu0 %752
    %754 = vrot.lane.b32.xlu0 %v749, 32
    %v755 = vpop.permute.xlu0 %754
    %vm758 = vcmask 257027
    %759 = vst.msk [vmem:[#allocation2] sm:$0x8] %vm758, %v753
    %760 = vst.msk [vmem:[#allocation2 + $0x8] sm:$0x8] %vm758, %v755
    %v761 = vrot.slane %v748, 3
    %v762 = vrot.slane %v749, 2
    %v763 = vsel %vm317, %v762, %v761
    %764 = vrot.lane.b32.xlu0 %v763, 32
    %v765 = vpop.permute.xlu0 %764
    %v766 = vsel %vm96, %v765, 0
    %768 = vmatprep.subr.mxu0 0.0
    %769 = vmatpush1.msra.mxu0 0.0
    %770 = vmatprep.subr.mxu0 0.0
    %771 = vmatpush1.msra.mxu0 0.0
    %772 = vmatprep.subr.mxu0 0.0
    %773 = vmatpush1.msra.mxu0 0.0
    %774 = vmatprep.subr.mxu0 0.0
    %775 = vmatpush1.msra.mxu0 0.0
    %776 = vmatprep.subr.mxu0 0.0
    %777 = vmatpush1.msra.mxu0 0.0
    %778 = vmatprep.subr.mxu0 0.0
    %779 = vmatpush1.msra.mxu0 0.0
    %780 = vmatprep.subr.mxu0 0.0
    %781 = vmatpush1.msra.mxu0 0.0
    %782 = vmatprep.subr.mxu0 0.0
    %783 = vmatpush1.msra.mxu0 0.0
    %784 = vmatprep.subr.mxu0 0.0
    %785 = vmatpush1.msra.mxu0 0.0
    %786 = vmatprep.subr.mxu0 0.0
    %787 = vmatpush1.msra.mxu0 0.0
    %788 = vmatprep.subr.mxu0 0.0
    %789 = vmatpush1.msra.mxu0 0.0
    %790 = vmatprep.subr.mxu0 0.0
    %791 = vmatpush1.msra.mxu0 0.0
    %792 = vmatprep.subr.mxu0 0.0
    %793 = vmatpush1.msra.mxu0 %v82
    %794 = vmatprep.subr.mxu0 0.0
    %795 = vmatpush1.msra.mxu0 %v81
    %796 = vmatprep.subr.mxu0 0.0
    %797 = vmatpush1.msra.mxu0 %v80
    %798 = vmatprep.subr.mxu0 0.0
    %799 = vmatpush1.msra.mxu0 %v79
    %800 = vmatprep.subr.mxu0 0.0
    %801 = vmatpush2.msra.mxu0 0.0
    %802 = vmatprep.subr.mxu0 0.0
    %803 = vmatpush2.msra.mxu0 0.0
    %804 = vmatprep.subr.mxu0 0.0
    %805 = vmatpush2.msra.mxu0 0.0
    %806 = vmatprep.subr.mxu0 0.0
    %807 = vmatpush2.msra.mxu0 0.0
    %808 = vmatprep.subr.mxu0 0.0
    %809 = vmatpush2.msra.mxu0 0.0
    %810 = vmatprep.subr.mxu0 0.0
    %811 = vmatpush2.msra.mxu0 0.0
    %812 = vmatprep.subr.mxu0 0.0
    %813 = vmatpush2.msra.mxu0 0.0
    %814 = vmatprep.subr.mxu0 0.0
    %815 = vmatpush2.msra.mxu0 0.0
    %816 = vmatprep.subr.mxu0 0.0
    %817 = vmatpush2.msra.mxu0 0.0
    %818 = vmatprep.subr.mxu0 0.0
    %819 = vmatpush2.msra.mxu0 0.0
    %820 = vmatprep.subr.mxu0 0.0
    %821 = vmatpush2.msra.mxu0 0.0
    %822 = vmatprep.subr.mxu0 0.0
    %823 = vmatpush2.msra.mxu0 0.0
    %824 = vmatprep.subr.mxu0 0.0
    %825 = vmatpush2.msra.mxu0 0.0
    %826 = vmatprep.subr.mxu0 0.0
    %827 = vmatpush2.msra.mxu0 0.0
    %828 = vmatprep.subr.mxu0 0.0
    %829 = vmatpush2.msra.mxu0 0.0
    %830 = vmatprep.subr.mxu0 0.0
    %831 = vmatpush2.msra.mxu0 0.0
    %832 = vmatprep.mubr.f32.mxu0 0.0
    %833 = vmatmul.mubr.f32.gmra.mxu0 %v766
    %v834 = vpop.f32.mrf.mxu0
    %v835 = vadd.f32 0.0, %v834
    %v836 = vpop.f32.mrf.mxu0
    %837 = vdwg.mxu0
    %v839 = vrot.slane %v835, 4
    %v840 = vrot.slane %v835, 5
    %v843 = vadd.f32 %v170, %v839
    %v844 = vadd.f32 %v175, %v840
    %v845 = vxor.u32 %v843, 2147483648
    %v846 = vxor.u32 %v844, 2147483648
    %v847 = vmul.f32 %v845, 1.442695
    %v848 = vpow.pop %v847
    %v849 = vmul.f32 %v846, 1.442695
    %v850 = vpow.pop %v849
    %v851 = vadd.f32 %v848, 1.0
    %v852 = vadd.f32 %v850, 1.0
    %v853 = vrcp.pop %v851
    %v854 = vmul.f32 1.0, %v853
    %v855 = vrcp.pop %v852
    %v856 = vmul.f32 1.0, %v855
    %v857 = vtanh.pop %v843
    %v858 = vtanh.pop %v844
    %v861 = vrot.slane %v736, 7
    %v862 = vrot.slane %v737, 7
    %v865 = vmul.f32 %v854, %v861
    %v866 = vmul.f32 %v856, %v862
    %869 = vrot.lane.b32.xlu0 %v857, 64
    %v870 = vpop.permute.xlu0 %869
    %871 = vrot.lane.b32.xlu0 %v858, 64
    %v872 = vpop.permute.xlu0 %871
    %v875 = vmul.f32 %v854, %v870
    %v876 = vmul.f32 %v856, %v872
    %879 = vrot.lane.b32.xlu0 %v875, 32
    %v880 = vpop.permute.xlu0 %879
    %881 = vrot.lane.b32.xlu0 %v876, 32
    %v882 = vpop.permute.xlu0 %881
    %v885 = vadd.f32 %v865, %v880
    %v886 = vadd.f32 %v866, %v882
    %v887 = vtanh.pop %v885
    %v888 = vtanh.pop %v886
    %891 = vrot.lane.b32.xlu0 %v887, 64
    %v892 = vpop.permute.xlu0 %891
    %893 = vrot.lane.b32.xlu0 %v888, 64
    %v894 = vpop.permute.xlu0 %893
    %v897 = vmul.f32 %v854, %v892
    %v898 = vmul.f32 %v856, %v894
    %901 = vrot.lane.b32.xlu0 %v897, 32
    %v902 = vpop.permute.xlu0 %901
    %903 = vrot.lane.b32.xlu0 %v898, 32
    %v904 = vpop.permute.xlu0 %903
    %vm907 = vcmask 258052
    %908 = vst.msk [vmem:[#allocation2] sm:$0x10] %vm907, %v902
    %909 = vst.msk [vmem:[#allocation2 + $0x8] sm:$0x10] %vm907, %v904
    %v910 = vrot.slane %v897, 4
    %v911 = vrot.slane %v898, 3
    %v912 = vsel %vm317, %v911, %v910
    %913 = vrot.lane.b32.xlu0 %v912, 32
    %v914 = vpop.permute.xlu0 %913
    %v915 = vsel %vm96, %v914, 0
    %917 = vmatprep.subr.mxu0 0.0
    %918 = vmatpush1.msra.mxu0 0.0
    %919 = vmatprep.subr.mxu0 0.0
    %920 = vmatpush1.msra.mxu0 0.0
    %921 = vmatprep.subr.mxu0 0.0
    %922 = vmatpush1.msra.mxu0 0.0
    %923 = vmatprep.subr.mxu0 0.0
    %924 = vmatpush1.msra.mxu0 0.0
    %925 = vmatprep.subr.mxu0 0.0
    %926 = vmatpush1.msra.mxu0 0.0
    %927 = vmatprep.subr.mxu0 0.0
    %928 = vmatpush1.msra.mxu0 0.0
    %929 = vmatprep.subr.mxu0 0.0
    %930 = vmatpush1.msra.mxu0 0.0
    %931 = vmatprep.subr.mxu0 0.0
    %932 = vmatpush1.msra.mxu0 0.0
    %933 = vmatprep.subr.mxu0 0.0
    %934 = vmatpush1.msra.mxu0 0.0
    %935 = vmatprep.subr.mxu0 0.0
    %936 = vmatpush1.msra.mxu0 0.0
    %937 = vmatprep.subr.mxu0 0.0
    %938 = vmatpush1.msra.mxu0 0.0
    %939 = vmatprep.subr.mxu0 0.0
    %940 = vmatpush1.msra.mxu0 0.0
    %941 = vmatprep.subr.mxu0 0.0
    %942 = vmatpush1.msra.mxu0 %v82
    %943 = vmatprep.subr.mxu0 0.0
    %944 = vmatpush1.msra.mxu0 %v81
    %945 = vmatprep.subr.mxu0 0.0
    %946 = vmatpush1.msra.mxu0 %v80
    %947 = vmatprep.subr.mxu0 0.0
    %948 = vmatpush1.msra.mxu0 %v79
    %949 = vmatprep.subr.mxu0 0.0
    %950 = vmatpush2.msra.mxu0 0.0
    %951 = vmatprep.subr.mxu0 0.0
    %952 = vmatpush2.msra.mxu0 0.0
    %953 = vmatprep.subr.mxu0 0.0
    %954 = vmatpush2.msra.mxu0 0.0
    %955 = vmatprep.subr.mxu0 0.0
    %956 = vmatpush2.msra.mxu0 0.0
    %957 = vmatprep.subr.mxu0 0.0
    %958 = vmatpush2.msra.mxu0 0.0
    %959 = vmatprep.subr.mxu0 0.0
    %960 = vmatpush2.msra.mxu0 0.0
    %961 = vmatprep.subr.mxu0 0.0
    %962 = vmatpush2.msra.mxu0 0.0
    %963 = vmatprep.subr.mxu0 0.0
    %964 = vmatpush2.msra.mxu0 0.0
    %965 = vmatprep.subr.mxu0 0.0
    %966 = vmatpush2.msra.mxu0 0.0
    %967 = vmatprep.subr.mxu0 0.0
    %968 = vmatpush2.msra.mxu0 0.0
    %969 = vmatprep.subr.mxu0 0.0
    %970 = vmatpush2.msra.mxu0 0.0
    %971 = vmatprep.subr.mxu0 0.0
    %972 = vmatpush2.msra.mxu0 0.0
    %973 = vmatprep.subr.mxu0 0.0
    %974 = vmatpush2.msra.mxu0 0.0
    %975 = vmatprep.subr.mxu0 0.0
    %976 = vmatpush2.msra.mxu0 0.0
    %977 = vmatprep.subr.mxu0 0.0
    %978 = vmatpush2.msra.mxu0 0.0
    %979 = vmatprep.subr.mxu0 0.0
    %980 = vmatpush2.msra.mxu0 0.0
    %981 = vmatprep.mubr.f32.mxu0 0.0
    %982 = vmatmul.mubr.f32.gmra.mxu0 %v915
    %v983 = vpop.f32.mrf.mxu0
    %v984 = vadd.f32 0.0, %v983
    %v985 = vpop.f32.mrf.mxu0
    %986 = vdwg.mxu0
    %v988 = vrot.slane %v984, 3
    %v989 = vrot.slane %v984, 4
    %v992 = vadd.f32 %v170, %v988
    %v993 = vadd.f32 %v175, %v989
    %v994 = vxor.u32 %v992, 2147483648
    %v995 = vxor.u32 %v993, 2147483648
    %v996 = vmul.f32 %v994, 1.442695
    %v997 = vpow.pop %v996
    %v998 = vmul.f32 %v995, 1.442695
    %v999 = vpow.pop %v998
    %v1000 = vadd.f32 %v997, 1.0
    %v1001 = vadd.f32 %v999, 1.0
    %v1002 = vrcp.pop %v1000
    %v1003 = vmul.f32 1.0, %v1002
    %v1004 = vrcp.pop %v1001
    %v1005 = vmul.f32 1.0, %v1004
    %v1006 = vtanh.pop %v992
    %v1007 = vtanh.pop %v993
    %v1010 = vrot.slane %v885, 7
    %v1011 = vrot.slane %v886, 7
    %v1014 = vmul.f32 %v1003, %v1010
    %v1015 = vmul.f32 %v1005, %v1011
    %1018 = vrot.lane.b32.xlu0 %v1006, 64
    %v1019 = vpop.permute.xlu0 %1018
    %1020 = vrot.lane.b32.xlu0 %v1007, 64
    %v1021 = vpop.permute.xlu0 %1020
    %v1024 = vmul.f32 %v1003, %v1019
    %v1025 = vmul.f32 %v1005, %v1021
    %1028 = vrot.lane.b32.xlu0 %v1024, 32
    %v1029 = vpop.permute.xlu0 %1028
    %1030 = vrot.lane.b32.xlu0 %v1025, 32
    %v1031 = vpop.permute.xlu0 %1030
    %v1034 = vadd.f32 %v1014, %v1029
    %v1035 = vadd.f32 %v1015, %v1031
    %v1036 = vtanh.pop %v1034
    %v1037 = vtanh.pop %v1035
    %1040 = vrot.lane.b32.xlu0 %v1036, 64
    %v1041 = vpop.permute.xlu0 %1040
    %1042 = vrot.lane.b32.xlu0 %v1037, 64
    %v1043 = vpop.permute.xlu0 %1042
    %v1046 = vmul.f32 %v1003, %v1041
    %v1047 = vmul.f32 %v1005, %v1043
    %1050 = vrot.lane.b32.xlu0 %v1046, 32
    %v1051 = vpop.permute.xlu0 %1050
    %1052 = vrot.lane.b32.xlu0 %v1047, 32
    %v1053 = vpop.permute.xlu0 %1052
    %vm1056 = vcmask 259077
    %1057 = vst.msk [vmem:[#allocation2] sm:$0x20] %vm1056, %v1051
    %1058 = vst.msk [vmem:[#allocation2 + $0x8] sm:$0x20] %vm1056, %v1053
    %v1059 = vrot.slane %v1046, 5
    %v1060 = vrot.slane %v1047, 4
    %v1061 = vsel %vm317, %v1060, %v1059
    %1062 = vrot.lane.b32.xlu0 %v1061, 32
    %v1063 = vpop.permute.xlu0 %1062
    %v1064 = vsel %vm96, %v1063, 0
    %1066 = vmatprep.subr.mxu0 0.0
    %1067 = vmatpush1.msra.mxu0 0.0
    %1068 = vmatprep.subr.mxu0 0.0
    %1069 = vmatpush1.msra.mxu0 0.0
    %1070 = vmatprep.subr.mxu0 0.0
    %1071 = vmatpush1.msra.mxu0 0.0
    %1072 = vmatprep.subr.mxu0 0.0
    %1073 = vmatpush1.msra.mxu0 0.0
    %1074 = vmatprep.subr.mxu0 0.0
    %1075 = vmatpush1.msra.mxu0 0.0
    %1076 = vmatprep.subr.mxu0 0.0
    %1077 = vmatpush1.msra.mxu0 0.0
    %1078 = vmatprep.subr.mxu0 0.0
    %1079 = vmatpush1.msra.mxu0 0.0
    %1080 = vmatprep.subr.mxu0 0.0
    %1081 = vmatpush1.msra.mxu0 0.0
    %1082 = vmatprep.subr.mxu0 0.0
    %1083 = vmatpush1.msra.mxu0 0.0
    %1084 = vmatprep.subr.mxu0 0.0
    %1085 = vmatpush1.msra.mxu0 0.0
    %1086 = vmatprep.subr.mxu0 0.0
    %1087 = vmatpush1.msra.mxu0 0.0
    %1088 = vmatprep.subr.mxu0 0.0
    %1089 = vmatpush1.msra.mxu0 0.0
    %1090 = vmatprep.subr.mxu0 0.0
    %1091 = vmatpush1.msra.mxu0 %v82
    %1092 = vmatprep.subr.mxu0 0.0
    %1093 = vmatpush1.msra.mxu0 %v81
    %1094 = vmatprep.subr.mxu0 0.0
    %1095 = vmatpush1.msra.mxu0 %v80
    %1096 = vmatprep.subr.mxu0 0.0
    %1097 = vmatpush1.msra.mxu0 %v79
    %1098 = vmatprep.subr.mxu0 0.0
    %1099 = vmatpush2.msra.mxu0 0.0
    %1100 = vmatprep.subr.mxu0 0.0
    %1101 = vmatpush2.msra.mxu0 0.0
    %1102 = vmatprep.subr.mxu0 0.0
    %1103 = vmatpush2.msra.mxu0 0.0
    %1104 = vmatprep.subr.mxu0 0.0
    %1105 = vmatpush2.msra.mxu0 0.0
    %1106 = vmatprep.subr.mxu0 0.0
    %1107 = vmatpush2.msra.mxu0 0.0
    %1108 = vmatprep.subr.mxu0 0.0
    %1109 = vmatpush2.msra.mxu0 0.0
    %1110 = vmatprep.subr.mxu0 0.0
    %1111 = vmatpush2.msra.mxu0 0.0
    %1112 = vmatprep.subr.mxu0 0.0
    %1113 = vmatpush2.msra.mxu0 0.0
    %1114 = vmatprep.subr.mxu0 0.0
    %1115 = vmatpush2.msra.mxu0 0.0
    %1116 = vmatprep.subr.mxu0 0.0
    %1117 = vmatpush2.msra.mxu0 0.0
    %1118 = vmatprep.subr.mxu0 0.0
    %1119 = vmatpush2.msra.mxu0 0.0
    %1120 = vmatprep.subr.mxu0 0.0
    %1121 = vmatpush2.msra.mxu0 0.0
    %1122 = vmatprep.subr.mxu0 0.0
    %1123 = vmatpush2.msra.mxu0 0.0
    %1124 = vmatprep.subr.mxu0 0.0
    %1125 = vmatpush2.msra.mxu0 0.0
    %1126 = vmatprep.subr.mxu0 0.0
    %1127 = vmatpush2.msra.mxu0 0.0
    %1128 = vmatprep.subr.mxu0 0.0
    %1129 = vmatpush2.msra.mxu0 0.0
    %1130 = vmatprep.mubr.f32.mxu0 0.0
    %1131 = vmatmul.mubr.f32.gmra.mxu0 %v1064
    %v1132 = vpop.f32.mrf.mxu0
    %v1133 = vadd.f32 0.0, %v1132
    %v1134 = vpop.f32.mrf.mxu0
    %1135 = vdwg.mxu0
    %v1137 = vrot.slane %v1133, 2
    %v1138 = vrot.slane %v1133, 3
    %v1141 = vadd.f32 %v170, %v1137
    %v1142 = vadd.f32 %v175, %v1138
    %v1143 = vxor.u32 %v1141, 2147483648
    %v1144 = vxor.u32 %v1142, 2147483648
    %v1145 = vmul.f32 %v1143, 1.442695
    %v1146 = vpow.pop %v1145
    %v1147 = vmul.f32 %v1144, 1.442695
    %v1148 = vpow.pop %v1147
    %v1149 = vadd.f32 %v1146, 1.0
    %v1150 = vadd.f32 %v1148, 1.0
    %v1151 = vrcp.pop %v1149
    %v1152 = vmul.f32 1.0, %v1151
    %v1153 = vrcp.pop %v1150
    %v1154 = vmul.f32 1.0, %v1153
    %v1155 = vtanh.pop %v1141
    %v1156 = vtanh.pop %v1142
    %v1159 = vrot.slane %v1034, 7
    %v1160 = vrot.slane %v1035, 7
    %v1163 = vmul.f32 %v1152, %v1159
    %v1164 = vmul.f32 %v1154, %v1160
    %1167 = vrot.lane.b32.xlu0 %v1155, 64
    %v1168 = vpop.permute.xlu0 %1167
    %1169 = vrot.lane.b32.xlu0 %v1156, 64
    %v1170 = vpop.permute.xlu0 %1169
    %v1173 = vmul.f32 %v1152, %v1168
    %v1174 = vmul.f32 %v1154, %v1170
    %1177 = vrot.lane.b32.xlu0 %v1173, 32
    %v1178 = vpop.permute.xlu0 %1177
    %1179 = vrot.lane.b32.xlu0 %v1174, 32
    %v1180 = vpop.permute.xlu0 %1179
    %v1183 = vadd.f32 %v1163, %v1178
    %v1184 = vadd.f32 %v1164, %v1180
    %v1185 = vtanh.pop %v1183
    %v1186 = vtanh.pop %v1184
    %1189 = vrot.lane.b32.xlu0 %v1185, 64
    %v1190 = vpop.permute.xlu0 %1189
    %1191 = vrot.lane.b32.xlu0 %v1186, 64
    %v1192 = vpop.permute.xlu0 %1191
    %v1195 = vmul.f32 %v1152, %v1190
    %v1196 = vmul.f32 %v1154, %v1192
    %1199 = vrot.lane.b32.xlu0 %v1195, 32
    %v1200 = vpop.permute.xlu0 %1199
    %1201 = vrot.lane.b32.xlu0 %v1196, 32
    %v1202 = vpop.permute.xlu0 %1201
    %vm1205 = vcmask 260102
    %1206 = vst.msk [vmem:[#allocation2] sm:$0x40] %vm1205, %v1200
    %1207 = vst.msk [vmem:[#allocation2 + $0x8] sm:$0x40] %vm1205, %v1202
    %v1208 = vrot.slane %v1195, 6
    %v1209 = vrot.slane %v1196, 5
    %v1210 = vsel %vm317, %v1209, %v1208
    %1211 = vrot.lane.b32.xlu0 %v1210, 32
    %v1212 = vpop.permute.xlu0 %1211
    %v1213 = vsel %vm96, %v1212, 0
    %1215 = vmatprep.subr.mxu0 0.0
    %1216 = vmatpush1.msra.mxu0 0.0
    %1217 = vmatprep.subr.mxu0 0.0
    %1218 = vmatpush1.msra.mxu0 0.0
    %1219 = vmatprep.subr.mxu0 0.0
    %1220 = vmatpush1.msra.mxu0 0.0
    %1221 = vmatprep.subr.mxu0 0.0
    %1222 = vmatpush1.msra.mxu0 0.0
    %1223 = vmatprep.subr.mxu0 0.0
    %1224 = vmatpush1.msra.mxu0 0.0
    %1225 = vmatprep.subr.mxu0 0.0
    %1226 = vmatpush1.msra.mxu0 0.0
    %1227 = vmatprep.subr.mxu0 0.0
    %1228 = vmatpush1.msra.mxu0 0.0
    %1229 = vmatprep.subr.mxu0 0.0
    %1230 = vmatpush1.msra.mxu0 0.0
    %1231 = vmatprep.subr.mxu0 0.0
    %1232 = vmatpush1.msra.mxu0 0.0
    %1233 = vmatprep.subr.mxu0 0.0
    %1234 = vmatpush1.msra.mxu0 0.0
    %1235 = vmatprep.subr.mxu0 0.0
    %1236 = vmatpush1.msra.mxu0 0.0
    %1237 = vmatprep.subr.mxu0 0.0
    %1238 = vmatpush1.msra.mxu0 0.0
    %1239 = vmatprep.subr.mxu0 0.0
    %1240 = vmatpush1.msra.mxu0 %v82
    %1241 = vmatprep.subr.mxu0 0.0
    %1242 = vmatpush1.msra.mxu0 %v81
    %1243 = vmatprep.subr.mxu0 0.0
    %1244 = vmatpush1.msra.mxu0 %v80
    %1245 = vmatprep.subr.mxu0 0.0
    %1246 = vmatpush1.msra.mxu0 %v79
    %1247 = vmatprep.subr.mxu0 0.0
    %1248 = vmatpush2.msra.mxu0 0.0
    %1249 = vmatprep.subr.mxu0 0.0
    %1250 = vmatpush2.msra.mxu0 0.0
    %1251 = vmatprep.subr.mxu0 0.0
    %1252 = vmatpush2.msra.mxu0 0.0
    %1253 = vmatprep.subr.mxu0 0.0
    %1254 = vmatpush2.msra.mxu0 0.0
    %1255 = vmatprep.subr.mxu0 0.0
    %1256 = vmatpush2.msra.mxu0 0.0
    %1257 = vmatprep.subr.mxu0 0.0
    %1258 = vmatpush2.msra.mxu0 0.0
    %1259 = vmatprep.subr.mxu0 0.0
    %1260 = vmatpush2.msra.mxu0 0.0
    %1261 = vmatprep.subr.mxu0 0.0
    %1262 = vmatpush2.msra.mxu0 0.0
    %1263 = vmatprep.subr.mxu0 0.0
    %1264 = vmatpush2.msra.mxu0 0.0
    %1265 = vmatprep.subr.mxu0 0.0
    %1266 = vmatpush2.msra.mxu0 0.0
    %1267 = vmatprep.subr.mxu0 0.0
    %1268 = vmatpush2.msra.mxu0 0.0
    %1269 = vmatprep.subr.mxu0 0.0
    %1270 = vmatpush2.msra.mxu0 0.0
    %1271 = vmatprep.subr.mxu0 0.0
    %1272 = vmatpush2.msra.mxu0 0.0
    %1273 = vmatprep.subr.mxu0 0.0
    %1274 = vmatpush2.msra.mxu0 0.0
    %1275 = vmatprep.subr.mxu0 0.0
    %1276 = vmatpush2.msra.mxu0 0.0
    %1277 = vmatprep.subr.mxu0 0.0
    %1278 = vmatpush2.msra.mxu0 0.0
    %1279 = vmatprep.mubr.f32.mxu0 0.0
    %1280 = vmatmul.mubr.f32.gmra.mxu0 %v1213
    %v1281 = vpop.f32.mrf.mxu0
    %v1282 = vadd.f32 0.0, %v1281
    %v1283 = vpop.f32.mrf.mxu0
    %1284 = vdwg.mxu0
    %v1286 = vrot.slane %v1282, 1
    %v1287 = vrot.slane %v1282, 2
    %v1290 = vadd.f32 %v170, %v1286
    %v1291 = vadd.f32 %v175, %v1287
    %v1292 = vxor.u32 %v1290, 2147483648
    %v1293 = vxor.u32 %v1291, 2147483648
    %v1294 = vmul.f32 %v1292, 1.442695
    %v1295 = vpow.pop %v1294
    %v1296 = vmul.f32 %v1293, 1.442695
    %v1297 = vpow.pop %v1296
    %v1298 = vadd.f32 %v1295, 1.0
    %v1299 = vadd.f32 %v1297, 1.0
    %v1300 = vrcp.pop %v1298
    %v1301 = vmul.f32 1.0, %v1300
    %v1302 = vrcp.pop %v1299
    %v1303 = vmul.f32 1.0, %v1302
    %v1304 = vtanh.pop %v1290
    %v1305 = vtanh.pop %v1291
    %v1308 = vrot.slane %v1183, 7
    %v1309 = vrot.slane %v1184, 7
    %v1312 = vmul.f32 %v1301, %v1308
    %v1313 = vmul.f32 %v1303, %v1309
    %1316 = vrot.lane.b32.xlu0 %v1304, 64
    %v1317 = vpop.permute.xlu0 %1316
    %1318 = vrot.lane.b32.xlu0 %v1305, 64
    %v1319 = vpop.permute.xlu0 %1318
    %v1322 = vmul.f32 %v1301, %v1317
    %v1323 = vmul.f32 %v1303, %v1319
    %1326 = vrot.lane.b32.xlu0 %v1322, 32
    %v1327 = vpop.permute.xlu0 %1326
    %1328 = vrot.lane.b32.xlu0 %v1323, 32
    %v1329 = vpop.permute.xlu0 %1328
    %v1332 = vadd.f32 %v1312, %v1327
    %v1333 = vadd.f32 %v1313, %v1329
    %v1334 = vtanh.pop %v1332
    %v1335 = vtanh.pop %v1333
    %1338 = vrot.lane.b32.xlu0 %v1334, 64
    %v1339 = vpop.permute.xlu0 %1338
    %1340 = vrot.lane.b32.xlu0 %v1335, 64
    %v1341 = vpop.permute.xlu0 %1340
    %v1344 = vmul.f32 %v1301, %v1339
    %v1345 = vmul.f32 %v1303, %v1341
    %1348 = vrot.lane.b32.xlu0 %v1344, 32
    %v1349 = vpop.permute.xlu0 %1348
    %1350 = vrot.lane.b32.xlu0 %v1345, 32
    %v1351 = vpop.permute.xlu0 %1350
    %vm1354 = vcmask 261127
    %1355 = vst.msk [vmem:[#allocation2] sm:$0x80] %vm1354, %v1349
    %1356 = vst.msk [vmem:[#allocation2 + $0x8] sm:$0x80] %vm1354, %v1351
    %v1357 = vld [vmem:[#allocation2] sm:$0xff]
    %v1358 = vld [vmem:[#allocation2 + $0x8] sm:$0xff]
    %v1359 = vld [vmem:[#allocation9] sm:$0xff]
    %v1360 = vld [vmem:[#allocation9 + $0x8] sm:$0xff]
    %v1361 = vld [vmem:[#allocation9 + $0x10] sm:$0xff]
    %v1362 = vld [vmem:[#allocation9 + $0x18] sm:$0xff]
    %v1363 = vld [vmem:[%s5] sm:$0x1]
    %v1365 = vlaneseq
    %v1366 = vshrl.u32 %v1365, 7
    %v1367 = vsub.s32 0, %v1366
    %v1368 = vrot.slane %v1363, %v1367
    %v1371 = vsel %vm96, %v1357, 0
    %v1374 = vsel %vm96, %v1358, 0
    %1376 = vmatprep.subr.mxu0 0.0
    %1377 = vmatpush1.msra.mxu0 0.0
    %1378 = vmatprep.subr.mxu0 0.0
    %1379 = vmatpush1.msra.mxu0 0.0
    %1380 = vmatprep.subr.mxu0 0.0
    %1381 = vmatpush1.msra.mxu0 0.0
    %1382 = vmatprep.subr.mxu0 0.0
    %1383 = vmatpush1.msra.mxu0 0.0
    %1384 = vmatprep.subr.mxu0 0.0
    %1385 = vmatpush1.msra.mxu0 0.0
    %1386 = vmatprep.subr.mxu0 0.0
    %1387 = vmatpush1.msra.mxu0 0.0
    %1388 = vmatprep.subr.mxu0 0.0
    %1389 = vmatpush1.msra.mxu0 0.0
    %1390 = vmatprep.subr.mxu0 0.0
    %1391 = vmatpush1.msra.mxu0 0.0
    %1392 = vmatprep.subr.mxu0 0.0
    %1393 = vmatpush1.msra.mxu0 0.0
    %1394 = vmatprep.subr.mxu0 0.0
    %1395 = vmatpush1.msra.mxu0 0.0
    %1396 = vmatprep.subr.mxu0 0.0
    %1397 = vmatpush1.msra.mxu0 0.0
    %1398 = vmatprep.subr.mxu0 0.0
    %1399 = vmatpush1.msra.mxu0 0.0
    %1400 = vmatprep.subr.mxu0 0.0
    %1401 = vmatpush1.msra.mxu0 %v1362
    %1402 = vmatprep.subr.mxu0 0.0
    %1403 = vmatpush1.msra.mxu0 %v1361
    %1404 = vmatprep.subr.mxu0 0.0
    %1405 = vmatpush1.msra.mxu0 %v1360
    %1406 = vmatprep.subr.mxu0 0.0
    %1407 = vmatpush1.msra.mxu0 %v1359
    %1408 = vmatprep.subr.mxu0 0.0
    %1409 = vmatpush2.msra.mxu0 0.0
    %1410 = vmatprep.subr.mxu0 0.0
    %1411 = vmatpush2.msra.mxu0 0.0
    %1412 = vmatprep.subr.mxu0 0.0
    %1413 = vmatpush2.msra.mxu0 0.0
    %1414 = vmatprep.subr.mxu0 0.0
    %1415 = vmatpush2.msra.mxu0 0.0
    %1416 = vmatprep.subr.mxu0 0.0
    %1417 = vmatpush2.msra.mxu0 0.0
    %1418 = vmatprep.subr.mxu0 0.0
    %1419 = vmatpush2.msra.mxu0 0.0
    %1420 = vmatprep.subr.mxu0 0.0
    %1421 = vmatpush2.msra.mxu0 0.0
    %1422 = vmatprep.subr.mxu0 0.0
    %1423 = vmatpush2.msra.mxu0 0.0
    %1424 = vmatprep.subr.mxu0 0.0
    %1425 = vmatpush2.msra.mxu0 0.0
    %1426 = vmatprep.subr.mxu0 0.0
    %1427 = vmatpush2.msra.mxu0 0.0
    %1428 = vmatprep.subr.mxu0 0.0
    %1429 = vmatpush2.msra.mxu0 0.0
    %1430 = vmatprep.subr.mxu0 0.0
    %1431 = vmatpush2.msra.mxu0 0.0
    %1432 = vmatprep.subr.mxu0 0.0
    %1433 = vmatpush2.msra.mxu0 0.0
    %1434 = vmatprep.subr.mxu0 0.0
    %1435 = vmatpush2.msra.mxu0 0.0
    %1436 = vmatprep.subr.mxu0 0.0
    %1437 = vmatpush2.msra.mxu0 0.0
    %1438 = vmatprep.subr.mxu0 0.0
    %1439 = vmatpush2.msra.mxu0 0.0
    %1440 = vmatprep.mubr.f32.mxu0 0.0
    %1441 = vmatmul.mubr.f32.gmra.mxu0 %v1371
    %v1442 = vpop.f32.mrf.mxu0
    %v1443 = vadd.f32 %v1368, %v1442
    %v1444 = vpop.f32.mrf.mxu0
    %1445 = vmatprep.mubr.f32.mxu0 0.0
    %1446 = vmatmul.mubr.f32.gmra.mxu0 %v1374
    %v1447 = vpop.f32.mrf.mxu0
    %v1448 = vadd.f32 %v1368, %v1447
    %v1449 = vpop.f32.mrf.mxu0
    %1450 = vdwg.mxu0
    %v1451 = vmax.f32 %v1443, 0.0
    %v1452 = vmax.f32 %v1448, 0.0
    %1453 = vst.msk [vmem:[#allocation11] sm:$0xff] %vm96, %v1451
    %1454 = vst.msk [vmem:[#allocation11 + $0x8] sm:$0xff] %vm96, %v1452
    // Predicated region
    $region42: #{tpu_custom_call.1} parent=1 // pred_check
      _
    $region43: #{tpu_custom_call.1} parent=1 // pred_check_branch
      %1456 = sbr.rel (0) target = $region45
    $region44: #{tpu_custom_call.1} parent=1 // pred_region
      %s1458 = ssub.s32 256, 256
      %1459 = vsyncadd [#allocation5], %s1458
      %s1460 = sshll.u32 [#allocation11], 4
      %s1461 = int_to_ptr.vmem [resolvable:$true] %s1460
      %1466 = dma.vmem_to_hbm [thread:$0]  %s1461, 256, %s6, [#allocation5], 128, 128, 8
    $region45: #{tpu_custom_call.1} parent=1 // pred_fallthru
      _
    // Predicated region
    $region46: #{tpu_custom_call.1} parent=1 // pred_check
      _
    $region47: #{tpu_custom_call.1} parent=1 // pred_check_branch
      %1468 = sbr.rel (0) target = $region49
    $region48: #{tpu_custom_call.1} parent=1 // pred_region
      %1469 = dma.done [#allocation5], 256
    $region49: #{tpu_custom_call.1} parent=1 // pred_fallthru
      _
    %1470 = vsyncpa [#allocation4], 1
    %1471 = vsyncpa [#allocation7], 1
    %1472 = vsyncpa [#allocation10], 1
    %1473 = vsyncpa [#allocation5], 1

</llo_original>
